<compile_context>
chip_gen: v7x
topology: tpu7x:2x2x1
jax: 0.10.0
libtpu: 0.0.40
codegen_flags: <defaults>
</compile_context>

<pallas_src>
import math

import jax
import jax.numpy as jnp
import numpy as np
from jax import lax
from jax.experimental import pallas as pl
from jax.experimental.pallas import tpu as pltpu

# ---- problem sizes (small, consistent with the module's forward) ----
B, S, D = 2, 8, 32          # batch, sequence_length, time_step_size
HEADS = 4
DH = D // HEADS
HID = 64                    # hidden width of the out_mlp
EPS = 1e-6                  # pytorch_wrapper LayerNorm eps
NEG_INF = -1e9

SMALLS_W = 3 * D            # 96 lanes: widest packed row (fused qkv bias)
# sublane-row layout of the packed small-parameter buffer (8, 96); every row
# starts at lane 0, so slicing it is free (no cross-lane moves).
_ROW_BQKV, _ROW_BO, _ROW_B1, _ROW_B2 = 0, 1, 2, 3
_ROW_G1, _ROW_BE1, _ROW_G2, _ROW_BE2 = 4, 5, 6, 7


def _layer_norm(x, gain, bias):
    # gain * (x - mean) / (std + eps) + bias, torch unbiased std, exact f32 divide.
    mean = jnp.mean(x, axis=-1, keepdims=True)
    xm = x - mean
    var = jnp.sum(xm * xm, axis=-1, keepdims=True) * (1.0 / (x.shape[-1] - 1))
    return gain * xm / (jnp.sqrt(var) + EPS) + bias


def encoder_block_kernel(len_ref,                     # scalar-prefetch: (B,) int32 in SMEM
                         x_ref,                       # (S, D)   this batch element
                         wqkv_ref,                    # (D, 3D)  fused q|k|v weight
                         wo_ref,                      # (D, D)
                         w1_ref,                      # (D, HID)
                         w2_ref,                      # (HID, D)
                         smalls_ref,                  # (8, 96)  packed small params
                         out_ref):                    # (S, D)
    b = pl.program_id(0)
    seq_len = len_ref[b]                              # scalar int32 from SMEM

    x = x_ref[...]                                    # (S, D) f32
    smalls = smalls_ref[...]                          # (8, 96)
    bqkv = smalls[_ROW_BQKV:_ROW_BQKV + 1, :3 * D]    # (1, 96)
    bo = smalls[_ROW_BO:_ROW_BO + 1, :D]
    b1 = smalls[_ROW_B1:_ROW_B1 + 1, :HID]
    b2 = smalls[_ROW_B2:_ROW_B2 + 1, :D]
    g1 = smalls[_ROW_G1:_ROW_G1 + 1, :D]
    be1 = smalls[_ROW_BE1:_ROW_BE1 + 1, :D]
    g2 = smalls[_ROW_G2:_ROW_G2 + 1, :D]
    be2 = smalls[_ROW_BE2:_ROW_BE2 + 1, :D]

    # ---- fused q/k/v projection: one (S, D) x (D, 3D) matmul ----
    qkv = jnp.dot(x, wqkv_ref[...], preferred_element_type=jnp.float32) + bqkv

    # ---- key padding mask (is_end_padded=True): keys at position >= length masked ----
    key_valid = lax.broadcasted_iota(jnp.int32, (1, S), 1) < seq_len     # (1, S)

    # ---- multi-head attention; per-head p@v lane-concatenated, single wo matmul ----
    scale = 1.0 / math.sqrt(DH)
    pv_heads = []
    for h in range(HEADS):                            # static loop over heads
        qh = qkv[:, h * DH:(h + 1) * DH]
        kh = qkv[:, D + h * DH:D + (h + 1) * DH]
        vh = qkv[:, 2 * D + h * DH:2 * D + (h + 1) * DH]
        scores = lax.dot_general(qh, kh, (((1,), (1,)), ((), ())),
                                 preferred_element_type=jnp.float32) * scale   # (S, S)
        scores = jnp.where(key_valid, scores, NEG_INF)
        scores = scores - jnp.max(scores, axis=-1, keepdims=True)
        p = jnp.exp(scores)
        p = p / jnp.sum(p, axis=-1, keepdims=True)    # exact divide
        pv_heads.append(jnp.dot(p, vh, preferred_element_type=jnp.float32))    # (S, DH)
    pv = jnp.concatenate(pv_heads, axis=-1)           # (S, D): lanes 0..32, one vreg
    attn = jnp.dot(pv, wo_ref[...], preferred_element_type=jnp.float32) + bo   # 1 MXU push

    x1 = x + attn                                     # dropout_1 with dp=0 is identity
    y1 = _layer_norm(x1, g1, be1)

    # ---- out_mlp: Linear -> ReLU -> Linear ----
    h1 = jnp.maximum(
        jnp.dot(y1, w1_ref[...], preferred_element_type=jnp.float32) + b1, 0.0)
    x2 = y1 + jnp.dot(h1, w2_ref[...], preferred_element_type=jnp.float32) + b2
    y2 = _layer_norm(x2, g2, be2)                     # dropout_2 with dp=0 is identity

    # ---- zero padded time-steps (create_mask_from_length, is_end_padded=True) ----
    q_valid = lax.broadcasted_iota(jnp.int32, (S, 1), 0) < seq_len       # (S, 1)
    out_ref[...] = jnp.where(q_valid, y2, 0.0)


def _pad_lanes(v, width):
    return jnp.pad(v, ((0, 0), (0, width - v.shape[1])))


def transformer_encoder_block(x, lengths, params):
    b, s, d = x.shape
    # Pre-fuse parameters (wrapper-side, outside the kernel): fused QKV weight and one
    # sublane-packed buffer (one parameter per row, every row starting at lane 0).
    wqkv = jnp.concatenate([params["wq"], params["wk"], params["wv"]], axis=1)   # (D, 3D)
    smalls = jnp.concatenate([
        _pad_lanes(jnp.concatenate([params["bq"], params["bk"], params["bv"]], axis=1),
                   SMALLS_W),
        _pad_lanes(params["bo"], SMALLS_W),
        _pad_lanes(params["b1"], SMALLS_W),
        _pad_lanes(params["b2"], SMALLS_W),
        _pad_lanes(params["g1"], SMALLS_W),
        _pad_lanes(params["be1"], SMALLS_W),
        _pad_lanes(params["g2"], SMALLS_W),
        _pad_lanes(params["be2"], SMALLS_W),
    ], axis=0)                                                                   # (8, 96)

    def const_spec(shape):
        # weights / packed params: constant index_map -> stay VMEM-resident across grid
        return pl.BlockSpec(shape, lambda i, lens: (0,) * len(shape))

    grid_spec = pltpu.PrefetchScalarGridSpec(
        num_scalar_prefetch=1,                 # lengths land in SMEM
        grid=(b,),                             # one independent (S, D) instance per step
        in_specs=[
            pl.BlockSpec((None, s, d), lambda i, lens: (i, 0, 0)),   # activations stream
            const_spec(wqkv.shape),
            const_spec(params["wo"].shape),
            const_spec(params["w1"].shape),
            const_spec(params["w2"].shape),
            const_spec(smalls.shape),
        ],
        out_specs=pl.BlockSpec((None, s, d), lambda i, lens: (i, 0, 0)),
    )
    out = pl.pallas_call(
        encoder_block_kernel,
        out_shape=jax.ShapeDtypeStruct((b, s, d), jnp.float32),
        grid_spec=grid_spec,
        compiler_params=pltpu.CompilerParams(
            dimension_semantics=("parallel",)),   # megacore sharding on v7x; harmless on v5e/v6e
    )(lengths, x, wqkv, params["wo"], params["w1"], params["w2"], smalls)
    return out


# ---------------- pure-JAX reference (same math) ----------------
def _layer_norm_ref(x, gain, bias):
    mean = jnp.mean(x, axis=-1, keepdims=True)
    var = jnp.sum((x - mean) ** 2, axis=-1, keepdims=True) / (x.shape[-1] - 1)
    return gain * (x - mean) / (jnp.sqrt(var) + EPS) + bias


def ref_forward(x, lengths, p):
    b, s, d = x.shape
    q = x @ p["wq"] + p["bq"]
    k = x @ p["wk"] + p["bk"]
    v = x @ p["wv"] + p["bv"]
    qh = q.reshape(b, s, HEADS, DH).transpose(0, 2, 1, 3)
    kh = k.reshape(b, s, HEADS, DH).transpose(0, 2, 1, 3)
    vh = v.reshape(b, s, HEADS, DH).transpose(0, 2, 1, 3)
    scores = jnp.einsum("bhqd,bhkd->bhqk", qh, kh) / math.sqrt(DH)
    key_mask = (jnp.arange(s)[None, :] < lengths[:, None])[:, None, None, :]
    scores = jnp.where(key_mask, scores, NEG_INF)
    pattn = jax.nn.softmax(scores, axis=-1)
    attn = jnp.einsum("bhqk,bhkd->bhqd", pattn, vh).transpose(0, 2, 1, 3).reshape(b, s, d)
    x1 = x + (attn @ p["wo"] + p["bo"])
    y1 = _layer_norm_ref(x1, p["g1"], p["be1"])
    h1 = jax.nn.relu(y1 @ p["w1"] + p["b1"])
    x2 = y1 + (h1 @ p["w2"] + p["b2"])
    y2 = _layer_norm_ref(x2, p["g2"], p["be2"])
    mask = (jnp.arange(s)[None, :] < lengths[:, None])[..., None]
    return jnp.where(mask, y2, 0.0)


def init_params(key):
    ks = jax.random.split(key, 12)
    f32 = jnp.float32
    return {
        "wq": jax.random.normal(ks[0], (D, D), f32) * 0.1,
        "bq": jax.random.normal(ks[1], (1, D), f32) * 0.01,
        "wk": jax.random.normal(ks[2], (D, D), f32) * 0.1,
        "bk": jax.random.normal(ks[3], (1, D), f32) * 0.01,
        "wv": jax.random.normal(ks[4], (D, D), f32) * 0.1,
        "bv": jax.random.normal(ks[5], (1, D), f32) * 0.01,
        "wo": jax.random.normal(ks[6], (D, D), f32) * 0.1,
        "bo": jax.random.normal(ks[7], (1, D), f32) * 0.01,
        "w1": jax.random.normal(ks[8], (D, HID), f32) * 0.1,
        "b1": jax.random.normal(ks[9], (1, HID), f32) * 0.01,
        "w2": jax.random.normal(ks[10], (HID, D), f32) * 0.1,
        "b2": jax.random.normal(ks[11], (1, D), f32) * 0.01,
        "g1": jnp.ones((1, D), f32),
        "be1": jnp.zeros((1, D), f32),
        "g2": jnp.ones((1, D), f32),
        "be2": jnp.zeros((1, D), f32),
    }


if __name__ == "__main__":
    key = jax.random.PRNGKey(0)
    k_x, k_p = jax.random.split(key)
    x = jax.random.normal(k_x, (B, S, D), jnp.float32)
    lengths = jnp.array([S, 5], dtype=jnp.int32)   # second sequence is end-padded
    params = init_params(k_p)

    out = transformer_encoder_block(x, lengths, params)
    out = jax.block_until_ready(out)

    ref = jax.block_until_ready(ref_forward(x, lengths, params))
    # The kernel uses exact divides everywhere; remaining deltas come only from the
    # different matmul accumulation paths (Mosaic MXU f32 vs XLA default precision).
    np.testing.assert_allclose(np.asarray(out), np.asarray(ref), atol=3e-3, rtol=3e-3)

    print("KERNEL_OK")
</pallas_src>

<mosaic_0001>
module attributes {stable_mosaic.version = 11 : i64} {
  func.func @encoder_block_kernel(%arg0: i32, %arg1: memref<2xi32, #tpu.memory_space<smem>>, %arg2: memref<1x8x32xf32, #tpu.memory_space<vmem>>, %arg3: memref<32x96xf32, #tpu.memory_space<vmem>>, %arg4: memref<32x32xf32, #tpu.memory_space<vmem>>, %arg5: memref<32x64xf32, #tpu.memory_space<vmem>>, %arg6: memref<64x32xf32, #tpu.memory_space<vmem>>, %arg7: memref<8x96xf32, #tpu.memory_space<vmem>>, %arg8: memref<1x8x32xf32, #tpu.memory_space<vmem>>) attributes {dimension_semantics = [#tpu.dimension_semantics<parallel>], iteration_bounds = array<i64: 2>, scalar_prefetch = 1 : i64, scratch_operands = 0 : i64, tpu.core_type = #tpu.core_type<tc>, window_params = [{transform_indices = @transform_0, window_bounds = array<i64: 1, 8, 32>}, {pipeline_mode = #tpu.pipeline_mode<synchronous>, transform_indices = @transform_1, window_bounds = array<i64: 32, 96>}, {pipeline_mode = #tpu.pipeline_mode<synchronous>, transform_indices = @transform_2, window_bounds = array<i64: 32, 32>}, {pipeline_mode = #tpu.pipeline_mode<synchronous>, transform_indices = @transform_3, window_bounds = array<i64: 32, 64>}, {pipeline_mode = #tpu.pipeline_mode<synchronous>, transform_indices = @transform_4, window_bounds = array<i64: 64, 32>}, {pipeline_mode = #tpu.pipeline_mode<synchronous>, transform_indices = @transform_5, window_bounds = array<i64: 8, 96>}, {transform_indices = @transform_6, window_bounds = array<i64: 1, 8, 32>}]} {
    %0 = arith.index_cast %arg0 : i32 to index
    %1 = memref.load %arg1[%0] : memref<2xi32, #tpu.memory_space<smem>>
    %c0 = arith.constant 0 : index
    %c0_0 = arith.constant 0 : index
    %c0_1 = arith.constant 0 : index
    %2 = vector.load %arg2[%c0, %c0_0, %c0_1] : memref<1x8x32xf32, #tpu.memory_space<vmem>>, vector<1x8x32xf32>
    %3 = vector.shape_cast %2 : vector<1x8x32xf32> to vector<8x32xf32>
    %c0_2 = arith.constant 0 : index
    %c0_3 = arith.constant 0 : index
    %4 = vector.load %arg7[%c0_2, %c0_3] : memref<8x96xf32, #tpu.memory_space<vmem>>, vector<8x96xf32>
    %5 = vector.extract_strided_slice %4 {offsets = [0, 0], sizes = [1, 96], strides = [1, 1]} : vector<8x96xf32> to vector<1x96xf32>
    %6 = vector.extract_strided_slice %4 {offsets = [1, 0], sizes = [1, 32], strides = [1, 1]} : vector<8x96xf32> to vector<1x32xf32>
    %7 = vector.extract_strided_slice %4 {offsets = [2, 0], sizes = [1, 64], strides = [1, 1]} : vector<8x96xf32> to vector<1x64xf32>
    %8 = vector.extract_strided_slice %4 {offsets = [3, 0], sizes = [1, 32], strides = [1, 1]} : vector<8x96xf32> to vector<1x32xf32>
    %9 = vector.extract_strided_slice %4 {offsets = [4, 0], sizes = [1, 32], strides = [1, 1]} : vector<8x96xf32> to vector<1x32xf32>
    %10 = vector.extract_strided_slice %4 {offsets = [5, 0], sizes = [1, 32], strides = [1, 1]} : vector<8x96xf32> to vector<1x32xf32>
    %11 = vector.extract_strided_slice %4 {offsets = [6, 0], sizes = [1, 32], strides = [1, 1]} : vector<8x96xf32> to vector<1x32xf32>
    %12 = vector.extract_strided_slice %4 {offsets = [7, 0], sizes = [1, 32], strides = [1, 1]} : vector<8x96xf32> to vector<1x32xf32>
    %c0_4 = arith.constant 0 : index
    %c0_5 = arith.constant 0 : index
    %13 = vector.load %arg3[%c0_4, %c0_5] : memref<32x96xf32, #tpu.memory_space<vmem>>, vector<32x96xf32>
    %cst = arith.constant dense<0.000000e+00> : vector<8x96xf32>
    %14 = tpu.matmul %3, %13, %cst {dimension_numbers = #tpu.dot_dimension_numbers<[1], [0], [0], [1], [0, 0, 1, 1], [], []>} : vector<8x32xf32>, vector<32x96xf32>, vector<8x96xf32> -> vector<8x96xf32>
    %15 = vector.broadcast %5 : vector<1x96xf32> to vector<8x96xf32>
    %16 = arith.addf %14, %15 : vector<8x96xf32>
    %17 = tpu.iota {dimensions = array<i32: 1>} : vector<1x8xi32>
    %18 = vector.broadcast %1 : i32 to vector<1x8xi32>
    %19 = arith.cmpi slt, %17, %18 : vector<1x8xi32>
    %20 = vector.extract_strided_slice %16 {offsets = [0, 0], sizes = [8, 8], strides = [1, 1]} : vector<8x96xf32> to vector<8x8xf32>
    %21 = vector.extract_strided_slice %16 {offsets = [0, 32], sizes = [8, 8], strides = [1, 1]} : vector<8x96xf32> to vector<8x8xf32>
    %22 = vector.extract_strided_slice %16 {offsets = [0, 64], sizes = [8, 8], strides = [1, 1]} : vector<8x96xf32> to vector<8x8xf32>
    %cst_6 = arith.constant dense<0.000000e+00> : vector<8x8xf32>
    %23 = tpu.matmul %20, %21, %cst_6 {dimension_numbers = #tpu.dot_dimension_numbers<[1], [1], [0], [0], [0, 0, 1, 0], [], []>} : vector<8x8xf32>, vector<8x8xf32>, vector<8x8xf32> -> vector<8x8xf32>
    %cst_7 = arith.constant 0.353553385 : f32
    %24 = vector.broadcast %cst_7 : f32 to vector<8x8xf32>
    %25 = arith.mulf %23, %24 : vector<8x8xf32>
    %cst_8 = arith.constant -1.000000e+09 : f32
    %26 = vector.shape_cast %19 : vector<1x8xi1> to vector<1x8xi1>
    %27 = vector.broadcast %26 : vector<1x8xi1> to vector<8x8xi1>
    %28 = vector.broadcast %cst_8 : f32 to vector<8x8xf32>
    %29 = arith.select %27, %25, %28 : vector<8x8xi1>, vector<8x8xf32>
    %cst_9 = arith.constant dense<0xFF800000> : vector<8xf32>
    %30 = vector.multi_reduction <maximumf>, %29, %cst_9 [1] : vector<8x8xf32> to vector<8xf32>
    %31 = vector.shape_cast %30 : vector<8xf32> to vector<8x1xf32>
    %32 = vector.broadcast %31 : vector<8x1xf32> to vector<8x8xf32>
    %33 = arith.subf %29, %32 : vector<8x8xf32>
    %34 = math.exp %33 : vector<8x8xf32>
    %cst_10 = arith.constant dense<0.000000e+00> : vector<8xf32>
    %35 = vector.multi_reduction <add>, %34, %cst_10 [1] : vector<8x8xf32> to vector<8xf32>
    %36 = vector.shape_cast %35 : vector<8xf32> to vector<8x1xf32>
    %37 = vector.broadcast %36 : vector<8x1xf32> to vector<8x8xf32>
    %38 = arith.divf %34, %37 : vector<8x8xf32>
    %cst_11 = arith.constant dense<0.000000e+00> : vector<8x8xf32>
    %39 = tpu.matmul %38, %22, %cst_11 {dimension_numbers = #tpu.dot_dimension_numbers<[1], [0], [0], [1], [0, 0, 1, 1], [], []>} : vector<8x8xf32>, vector<8x8xf32>, vector<8x8xf32> -> vector<8x8xf32>
    %40 = vector.extract_strided_slice %16 {offsets = [0, 8], sizes = [8, 8], strides = [1, 1]} : vector<8x96xf32> to vector<8x8xf32>
    %41 = vector.extract_strided_slice %16 {offsets = [0, 40], sizes = [8, 8], strides = [1, 1]} : vector<8x96xf32> to vector<8x8xf32>
    %42 = vector.extract_strided_slice %16 {offsets = [0, 72], sizes = [8, 8], strides = [1, 1]} : vector<8x96xf32> to vector<8x8xf32>
    %cst_12 = arith.constant dense<0.000000e+00> : vector<8x8xf32>
    %43 = tpu.matmul %40, %41, %cst_12 {dimension_numbers = #tpu.dot_dimension_numbers<[1], [1], [0], [0], [0, 0, 1, 0], [], []>} : vector<8x8xf32>, vector<8x8xf32>, vector<8x8xf32> -> vector<8x8xf32>
    %cst_13 = arith.constant 0.353553385 : f32
    %44 = vector.broadcast %cst_13 : f32 to vector<8x8xf32>
    %45 = arith.mulf %43, %44 : vector<8x8xf32>
    %cst_14 = arith.constant -1.000000e+09 : f32
    %46 = vector.shape_cast %19 : vector<1x8xi1> to vector<1x8xi1>
    %47 = vector.broadcast %46 : vector<1x8xi1> to vector<8x8xi1>
    %48 = vector.broadcast %cst_14 : f32 to vector<8x8xf32>
    %49 = arith.select %47, %45, %48 : vector<8x8xi1>, vector<8x8xf32>
    %cst_15 = arith.constant dense<0xFF800000> : vector<8xf32>
    %50 = vector.multi_reduction <maximumf>, %49, %cst_15 [1] : vector<8x8xf32> to vector<8xf32>
    %51 = vector.shape_cast %50 : vector<8xf32> to vector<8x1xf32>
    %52 = vector.broadcast %51 : vector<8x1xf32> to vector<8x8xf32>
    %53 = arith.subf %49, %52 : vector<8x8xf32>
    %54 = math.exp %53 : vector<8x8xf32>
    %cst_16 = arith.constant dense<0.000000e+00> : vector<8xf32>
    %55 = vector.multi_reduction <add>, %54, %cst_16 [1] : vector<8x8xf32> to vector<8xf32>
    %56 = vector.shape_cast %55 : vector<8xf32> to vector<8x1xf32>
    %57 = vector.broadcast %56 : vector<8x1xf32> to vector<8x8xf32>
    %58 = arith.divf %54, %57 : vector<8x8xf32>
    %cst_17 = arith.constant dense<0.000000e+00> : vector<8x8xf32>
    %59 = tpu.matmul %58, %42, %cst_17 {dimension_numbers = #tpu.dot_dimension_numbers<[1], [0], [0], [1], [0, 0, 1, 1], [], []>} : vector<8x8xf32>, vector<8x8xf32>, vector<8x8xf32> -> vector<8x8xf32>
    %60 = vector.extract_strided_slice %16 {offsets = [0, 16], sizes = [8, 8], strides = [1, 1]} : vector<8x96xf32> to vector<8x8xf32>
    %61 = vector.extract_strided_slice %16 {offsets = [0, 48], sizes = [8, 8], strides = [1, 1]} : vector<8x96xf32> to vector<8x8xf32>
    %62 = vector.extract_strided_slice %16 {offsets = [0, 80], sizes = [8, 8], strides = [1, 1]} : vector<8x96xf32> to vector<8x8xf32>
    %cst_18 = arith.constant dense<0.000000e+00> : vector<8x8xf32>
    %63 = tpu.matmul %60, %61, %cst_18 {dimension_numbers = #tpu.dot_dimension_numbers<[1], [1], [0], [0], [0, 0, 1, 0], [], []>} : vector<8x8xf32>, vector<8x8xf32>, vector<8x8xf32> -> vector<8x8xf32>
    %cst_19 = arith.constant 0.353553385 : f32
    %64 = vector.broadcast %cst_19 : f32 to vector<8x8xf32>
    %65 = arith.mulf %63, %64 : vector<8x8xf32>
    %cst_20 = arith.constant -1.000000e+09 : f32
    %66 = vector.shape_cast %19 : vector<1x8xi1> to vector<1x8xi1>
    %67 = vector.broadcast %66 : vector<1x8xi1> to vector<8x8xi1>
    %68 = vector.broadcast %cst_20 : f32 to vector<8x8xf32>
    %69 = arith.select %67, %65, %68 : vector<8x8xi1>, vector<8x8xf32>
    %cst_21 = arith.constant dense<0xFF800000> : vector<8xf32>
    %70 = vector.multi_reduction <maximumf>, %69, %cst_21 [1] : vector<8x8xf32> to vector<8xf32>
    %71 = vector.shape_cast %70 : vector<8xf32> to vector<8x1xf32>
    %72 = vector.broadcast %71 : vector<8x1xf32> to vector<8x8xf32>
    %73 = arith.subf %69, %72 : vector<8x8xf32>
    %74 = math.exp %73 : vector<8x8xf32>
    %cst_22 = arith.constant dense<0.000000e+00> : vector<8xf32>
    %75 = vector.multi_reduction <add>, %74, %cst_22 [1] : vector<8x8xf32> to vector<8xf32>
    %76 = vector.shape_cast %75 : vector<8xf32> to vector<8x1xf32>
    %77 = vector.broadcast %76 : vector<8x1xf32> to vector<8x8xf32>
    %78 = arith.divf %74, %77 : vector<8x8xf32>
    %cst_23 = arith.constant dense<0.000000e+00> : vector<8x8xf32>
    %79 = tpu.matmul %78, %62, %cst_23 {dimension_numbers = #tpu.dot_dimension_numbers<[1], [0], [0], [1], [0, 0, 1, 1], [], []>} : vector<8x8xf32>, vector<8x8xf32>, vector<8x8xf32> -> vector<8x8xf32>
    %80 = vector.extract_strided_slice %16 {offsets = [0, 24], sizes = [8, 8], strides = [1, 1]} : vector<8x96xf32> to vector<8x8xf32>
    %81 = vector.extract_strided_slice %16 {offsets = [0, 56], sizes = [8, 8], strides = [1, 1]} : vector<8x96xf32> to vector<8x8xf32>
    %82 = vector.extract_strided_slice %16 {offsets = [0, 88], sizes = [8, 8], strides = [1, 1]} : vector<8x96xf32> to vector<8x8xf32>
    %cst_24 = arith.constant dense<0.000000e+00> : vector<8x8xf32>
    %83 = tpu.matmul %80, %81, %cst_24 {dimension_numbers = #tpu.dot_dimension_numbers<[1], [1], [0], [0], [0, 0, 1, 0], [], []>} : vector<8x8xf32>, vector<8x8xf32>, vector<8x8xf32> -> vector<8x8xf32>
    %cst_25 = arith.constant 0.353553385 : f32
    %84 = vector.broadcast %cst_25 : f32 to vector<8x8xf32>
    %85 = arith.mulf %83, %84 : vector<8x8xf32>
    %cst_26 = arith.constant -1.000000e+09 : f32
    %86 = vector.shape_cast %19 : vector<1x8xi1> to vector<1x8xi1>
    %87 = vector.broadcast %86 : vector<1x8xi1> to vector<8x8xi1>
    %88 = vector.broadcast %cst_26 : f32 to vector<8x8xf32>
    %89 = arith.select %87, %85, %88 : vector<8x8xi1>, vector<8x8xf32>
    %cst_27 = arith.constant dense<0xFF800000> : vector<8xf32>
    %90 = vector.multi_reduction <maximumf>, %89, %cst_27 [1] : vector<8x8xf32> to vector<8xf32>
    %91 = vector.shape_cast %90 : vector<8xf32> to vector<8x1xf32>
    %92 = vector.broadcast %91 : vector<8x1xf32> to vector<8x8xf32>
    %93 = arith.subf %89, %92 : vector<8x8xf32>
    %94 = math.exp %93 : vector<8x8xf32>
    %cst_28 = arith.constant dense<0.000000e+00> : vector<8xf32>
    %95 = vector.multi_reduction <add>, %94, %cst_28 [1] : vector<8x8xf32> to vector<8xf32>
    %96 = vector.shape_cast %95 : vector<8xf32> to vector<8x1xf32>
    %97 = vector.broadcast %96 : vector<8x1xf32> to vector<8x8xf32>
    %98 = arith.divf %94, %97 : vector<8x8xf32>
    %cst_29 = arith.constant dense<0.000000e+00> : vector<8x8xf32>
    %99 = tpu.matmul %98, %82, %cst_29 {dimension_numbers = #tpu.dot_dimension_numbers<[1], [0], [0], [1], [0, 0, 1, 1], [], []>} : vector<8x8xf32>, vector<8x8xf32>, vector<8x8xf32> -> vector<8x8xf32>
    %100 = tpu.concatenate %39, %59, %79, %99 in 1 : vector<8x8xf32>, vector<8x8xf32>, vector<8x8xf32>, vector<8x8xf32> -> vector<8x32xf32>
    %c0_30 = arith.constant 0 : index
    %c0_31 = arith.constant 0 : index
    %101 = vector.load %arg4[%c0_30, %c0_31] : memref<32x32xf32, #tpu.memory_space<vmem>>, vector<32x32xf32>
    %cst_32 = arith.constant dense<0.000000e+00> : vector<8x32xf32>
    %102 = tpu.matmul %100, %101, %cst_32 {dimension_numbers = #tpu.dot_dimension_numbers<[1], [0], [0], [1], [0, 0, 1, 1], [], []>} : vector<8x32xf32>, vector<32x32xf32>, vector<8x32xf32> -> vector<8x32xf32>
    %103 = vector.broadcast %6 : vector<1x32xf32> to vector<8x32xf32>
    %104 = arith.addf %102, %103 : vector<8x32xf32>
    %105 = arith.addf %3, %104 : vector<8x32xf32>
    %cst_33 = arith.constant dense<0.000000e+00> : vector<8xf32>
    %106 = vector.multi_reduction <add>, %105, %cst_33 [1] : vector<8x32xf32> to vector<8xf32>
    %107 = vector.shape_cast %106 : vector<8xf32> to vector<8x1xf32>
    %cst_34 = arith.constant 3.200000e+01 : f32
    %108 = vector.broadcast %cst_34 : f32 to vector<8x1xf32>
    %109 = arith.divf %107, %108 : vector<8x1xf32>
    %110 = vector.broadcast %109 : vector<8x1xf32> to vector<8x32xf32>
    %111 = arith.subf %105, %110 : vector<8x32xf32>
    %112 = arith.mulf %111, %111 : vector<8x32xf32>
    %cst_35 = arith.constant dense<0.000000e+00> : vector<8xf32>
    %113 = vector.multi_reduction <add>, %112, %cst_35 [1] : vector<8x32xf32> to vector<8xf32>
    %114 = vector.shape_cast %113 : vector<8xf32> to vector<8x1xf32>
    %cst_36 = arith.constant 0.0322580636 : f32
    %115 = vector.broadcast %cst_36 : f32 to vector<8x1xf32>
    %116 = arith.mulf %114, %115 : vector<8x1xf32>
    %117 = vector.broadcast %9 : vector<1x32xf32> to vector<8x32xf32>
    %118 = arith.mulf %117, %111 : vector<8x32xf32>
    %119 = math.sqrt %116 : vector<8x1xf32>
    %cst_37 = arith.constant 9.99999997E-7 : f32
    %120 = vector.broadcast %cst_37 : f32 to vector<8x1xf32>
    %121 = arith.addf %119, %120 : vector<8x1xf32>
    %122 = vector.broadcast %121 : vector<8x1xf32> to vector<8x32xf32>
    %123 = arith.divf %118, %122 : vector<8x32xf32>
    %124 = vector.broadcast %10 : vector<1x32xf32> to vector<8x32xf32>
    %125 = arith.addf %123, %124 : vector<8x32xf32>
    %c0_38 = arith.constant 0 : index
    %c0_39 = arith.constant 0 : index
    %126 = vector.load %arg5[%c0_38, %c0_39] : memref<32x64xf32, #tpu.memory_space<vmem>>, vector<32x64xf32>
    %cst_40 = arith.constant dense<0.000000e+00> : vector<8x64xf32>
    %127 = tpu.matmul %125, %126, %cst_40 {dimension_numbers = #tpu.dot_dimension_numbers<[1], [0], [0], [1], [0, 0, 1, 1], [], []>} : vector<8x32xf32>, vector<32x64xf32>, vector<8x64xf32> -> vector<8x64xf32>
    %128 = vector.broadcast %7 : vector<1x64xf32> to vector<8x64xf32>
    %129 = arith.addf %127, %128 : vector<8x64xf32>
    %cst_41 = arith.constant 0.000000e+00 : f32
    %130 = vector.broadcast %cst_41 : f32 to vector<8x64xf32>
    %131 = arith.maximumf %129, %130 : vector<8x64xf32>
    %c0_42 = arith.constant 0 : index
    %c0_43 = arith.constant 0 : index
    %132 = vector.load %arg6[%c0_42, %c0_43] : memref<64x32xf32, #tpu.memory_space<vmem>>, vector<64x32xf32>
    %cst_44 = arith.constant dense<0.000000e+00> : vector<8x32xf32>
    %133 = tpu.matmul %131, %132, %cst_44 {dimension_numbers = #tpu.dot_dimension_numbers<[1], [0], [0], [1], [0, 0, 1, 1], [], []>} : vector<8x64xf32>, vector<64x32xf32>, vector<8x32xf32> -> vector<8x32xf32>
    %134 = arith.addf %125, %133 : vector<8x32xf32>
    %135 = vector.broadcast %8 : vector<1x32xf32> to vector<8x32xf32>
    %136 = arith.addf %134, %135 : vector<8x32xf32>
    %cst_45 = arith.constant dense<0.000000e+00> : vector<8xf32>
    %137 = vector.multi_reduction <add>, %136, %cst_45 [1] : vector<8x32xf32> to vector<8xf32>
    %138 = vector.shape_cast %137 : vector<8xf32> to vector<8x1xf32>
    %cst_46 = arith.constant 3.200000e+01 : f32
    %139 = vector.broadcast %cst_46 : f32 to vector<8x1xf32>
    %140 = arith.divf %138, %139 : vector<8x1xf32>
    %141 = vector.broadcast %140 : vector<8x1xf32> to vector<8x32xf32>
    %142 = arith.subf %136, %141 : vector<8x32xf32>
    %143 = arith.mulf %142, %142 : vector<8x32xf32>
    %cst_47 = arith.constant dense<0.000000e+00> : vector<8xf32>
    %144 = vector.multi_reduction <add>, %143, %cst_47 [1] : vector<8x32xf32> to vector<8xf32>
    %145 = vector.shape_cast %144 : vector<8xf32> to vector<8x1xf32>
    %cst_48 = arith.constant 0.0322580636 : f32
    %146 = vector.broadcast %cst_48 : f32 to vector<8x1xf32>
    %147 = arith.mulf %145, %146 : vector<8x1xf32>
    %148 = vector.broadcast %11 : vector<1x32xf32> to vector<8x32xf32>
    %149 = arith.mulf %148, %142 : vector<8x32xf32>
    %150 = math.sqrt %147 : vector<8x1xf32>
    %cst_49 = arith.constant 9.99999997E-7 : f32
    %151 = vector.broadcast %cst_49 : f32 to vector<8x1xf32>
    %152 = arith.addf %150, %151 : vector<8x1xf32>
    %153 = vector.broadcast %152 : vector<8x1xf32> to vector<8x32xf32>
    %154 = arith.divf %149, %153 : vector<8x32xf32>
    %155 = vector.broadcast %12 : vector<1x32xf32> to vector<8x32xf32>
    %156 = arith.addf %154, %155 : vector<8x32xf32>
    %157 = tpu.iota {dimensions = array<i32: 0>} : vector<8x1xi32>
    %158 = vector.broadcast %1 : i32 to vector<8x1xi32>
    %159 = arith.cmpi slt, %157, %158 : vector<8x1xi32>
    %cst_50 = arith.constant 0.000000e+00 : f32
    %160 = vector.shape_cast %159 : vector<8x1xi1> to vector<8x1xi1>
    %161 = vector.broadcast %160 : vector<8x1xi1> to vector<8x32xi1>
    %162 = vector.broadcast %cst_50 : f32 to vector<8x32xf32>
    %163 = arith.select %161, %156, %162 : vector<8x32xi1>, vector<8x32xf32>
    %c0_51 = arith.constant 0 : index
    %c0_52 = arith.constant 0 : index
    %c0_53 = arith.constant 0 : index
    %164 = vector.load %arg8[%c0_51, %c0_52, %c0_53] : memref<1x8x32xf32, #tpu.memory_space<vmem>>, vector<1x8x32xf32>
    %165 = vector.shape_cast %164 : vector<1x8x32xf32> to vector<8x32xf32>
    %166 = vector.shape_cast %163 : vector<8x32xf32> to vector<1x8x32xf32>
    tpu.vector_store %arg8[%c0_51, %c0_52, %c0_53], %166 {strides = array<i32>} : memref<1x8x32xf32, #tpu.memory_space<vmem>>, vector<1x8x32xf32>,
    return
  }
  func.func @transform_0(%arg0: i32, %arg1: memref<2xi32, #tpu.memory_space<smem>>) -> (i32, i32, i32) {
    %c0_i32 = arith.constant 0 : i32
    %c0_i32_0 = arith.constant 0 : i32
    %c0_i32_1 = arith.constant 0 : i32
    return %arg0, %c0_i32, %c0_i32_0 : i32, i32, i32
  }
  func.func @transform_1(%arg0: i32, %arg1: memref<2xi32, #tpu.memory_space<smem>>) -> (i32, i32) {
    %c0_i32 = arith.constant 0 : i32
    %c0_i32_0 = arith.constant 0 : i32
    %c0_i32_1 = arith.constant 0 : i32
    return %c0_i32, %c0_i32_0 : i32, i32
  }
  func.func @transform_2(%arg0: i32, %arg1: memref<2xi32, #tpu.memory_space<smem>>) -> (i32, i32) {
    %c0_i32 = arith.constant 0 : i32
    %c0_i32_0 = arith.constant 0 : i32
    %c0_i32_1 = arith.constant 0 : i32
    return %c0_i32, %c0_i32_0 : i32, i32
  }
  func.func @transform_3(%arg0: i32, %arg1: memref<2xi32, #tpu.memory_space<smem>>) -> (i32, i32) {
    %c0_i32 = arith.constant 0 : i32
    %c0_i32_0 = arith.constant 0 : i32
    %c0_i32_1 = arith.constant 0 : i32
    return %c0_i32, %c0_i32_0 : i32, i32
  }
  func.func @transform_4(%arg0: i32, %arg1: memref<2xi32, #tpu.memory_space<smem>>) -> (i32, i32) {
    %c0_i32 = arith.constant 0 : i32
    %c0_i32_0 = arith.constant 0 : i32
    %c0_i32_1 = arith.constant 0 : i32
    return %c0_i32, %c0_i32_0 : i32, i32
  }
  func.func @transform_5(%arg0: i32, %arg1: memref<2xi32, #tpu.memory_space<smem>>) -> (i32, i32) {
    %c0_i32 = arith.constant 0 : i32
    %c0_i32_0 = arith.constant 0 : i32
    %c0_i32_1 = arith.constant 0 : i32
    return %c0_i32, %c0_i32_0 : i32, i32
  }
  func.func @transform_6(%arg0: i32, %arg1: memref<2xi32, #tpu.memory_space<smem>>) -> (i32, i32, i32) {
    %c0_i32 = arith.constant 0 : i32
    %c0_i32_0 = arith.constant 0 : i32
    %c0_i32_1 = arith.constant 0 : i32
    return %arg0, %c0_i32, %c0_i32_0 : i32, i32, i32
  }
}

</mosaic_0001>

<llo_original>
// kernel: tpu_custom_call.1
$region0: #{tpu_custom_call.1}
  #allocation0 [shape = 'u32[]', space=smem, size = 0x4, offset = 0x4, fixed_abs, tag = 'smem constant byte address 0x4 - core index']
  #allocation1 [shape = 'u32[144,128]{1,0:T(1,128)}', space=vmem, size = 0x12000, scoped, tag = 'internal scratch']
  #allocation2 [shape = 's32[1]{0}', space=sflag, size = 0x4, scoped, tag = 'scoped memory for tpu_custom_call.1']
  #allocation3 [shape = 'u8[512]{0}', space=smem, size = 0x200, scoped, tag = 'prefetched SMEM operand 0']
  %s0 = inlined_call_operand.hbm [shape: s32[2], index: 0, kind: input, shape index: {}]
  %s1 = inlined_call_operand.hbm [shape: f32[2,8,32], index: 1, kind: input, shape index: {}]
  %s2 = inlined_call_operand.vmem [shape: f32[32,96], index: 2, kind: input, shape index: {}]
  %s3 = inlined_call_operand.vmem [shape: f32[32,32], index: 3, kind: input, shape index: {}]
  %s4 = inlined_call_operand.vmem [shape: f32[32,64], index: 4, kind: input, shape index: {}]
  %s5 = inlined_call_operand.vmem [shape: f32[64,32], index: 5, kind: input, shape index: {}]
  %s6 = inlined_call_operand.vmem [shape: f32[8,96], index: 6, kind: input, shape index: {}]
  %s7 = inlined_call_operand.hbm [shape: f32[2,8,32], index: 7, kind: output, shape index: {}]
  %s8 = sld [smem:[#allocation0]]
  $region61: #{tpu_custom_call.1} parent=0
    _
  %s10 = ssub.s32 1, %s8
  %s11 = scalar_select 0, %s10, %s8
  %13 = dma.hbm_to_smem %s0, 16, [#allocation3], [#allocation2]
  %14 = dma.done [#allocation2], 16
  %15 = sfence
  $region1: #{tpu_custom_call.1} parent=0
    #allocation4 [shape = 'u8[8192]{0}', space=vmem, size = 0x2000, scoped, tag = 'input window, operand 1']
    #allocation5 [shape = 's32[2]{0}', space=sflag, size = 0x8, scoped, tag = 'scoped memory for tpu_custom_call.1']
    #allocation6 [shape = 's32[2]{0}', space=sflag, size = 0x8, scoped, tag = 'scoped memory for tpu_custom_call.1']
    #allocation7 [shape = 'u8[8192]{0}', space=vmem, size = 0x2000, scoped, tag = 'output window, operand 0']
    %16 = vsyncpa [#allocation5], 0
    %s17 = scalar_lea.sflag [#allocation5], 1
    %18 = vsyncpa %s17, 0
    %19 = vsyncpa [#allocation6], 0
    %s20 = scalar_lea.sflag [#allocation6], 1
    %21 = vsyncpa %s20, 0
    loop: start=0, step=1, limit=4
    $region2: #{tpu_custom_call.1} parent=1 // loop_pre_header
      _
    $region3: #{tpu_custom_call.1} parent=1 // loop_header
      %s23 = sphi 0, %s27
      %p24 = scmp.ge.s32.totalorder %s23, 4
      %s33 = sphi 0, %s35
      %s36 = sphi 0, %s33
      %s37 = sphi 0, %s36
      %s53 = sphi 0, %s37
      %s57 = sphi 0, %s57
      %s59 = sphi 0, %s57
      %s60 = sphi 0, %s59
      %s74 = sphi 0, %s60
      %s78 = sphi 0, %s78
      %s80 = sphi 0, %s78
      %s81 = sphi 0, %s80
      %s95 = sphi 0, %s81
      %s99 = sphi 0, %s99
      %s101 = sphi 0, %s99
      %s102 = sphi 0, %s101
      %s116 = sphi 0, %s102
      %s120 = sphi 0, %s120
      %s122 = sphi 0, %s120
      %s123 = sphi 0, %s122
      %s137 = sphi 0, %s123
      %s141 = sphi 0, %s141
      %s143 = sphi 0, %s141
      %s144 = sphi 0, %s143
      %s158 = sphi 0, %s144
      %s164 = sphi 0, %s166
      %s167 = sphi 0, %s164
      %s168 = sphi 0, %s167
      %s184 = sphi 0, %s168
    $region4: #{tpu_custom_call.1} parent=1 // loop_header_branch
      %26 = sbr.rel (%p24) target = $region8
    $region5: #{tpu_custom_call.1} parent=1 // loop_body
      %s28 = ssub.s32 %s23, 1
      %s29 = ssub.s32 %s23, 2
      %s30 = sadd.s32 %s23, 1
      %s31 = ssub.s32 %s23, %s30
      %p32 = scmp.eq.s32.totalorder %s31, 0
      %s34 = sadd.s32 %s33, 1
      %s35 = scalar_select %p32, %s33, %s34
      %p38 = pneg %p32
      %p39 = scmp.eq.s32.totalorder %s23, 1
      %p40 = por %p38, %p39
      %p41 = scmp.ne.s32.totalorder %s33, %s36
      %p42 = scmp.eq.s32.totalorder %s23, 0
      %p43 = por %p41, %p42
      %p44 = scmp.ne.s32.totalorder %s33, %s36
      %p45 = scmp.eq.s32.totalorder %s28, 1
      %p46 = por %p44, %p45
      %p47 = scmp.ne.s32.totalorder %s36, %s37
      %p48 = scmp.eq.s32.totalorder %s28, 0
      %p49 = por %p47, %p48
      %p50 = scmp.ne.s32.totalorder %s36, %s37
      %p51 = scmp.eq.s32.totalorder %s29, 1
      %p52 = por %p50, %p51
      %p54 = scmp.ne.s32.totalorder %s37, %s53
      %p55 = scmp.eq.s32.totalorder %s29, 0
      %p56 = por %p54, %p55
      %s58 = sadd.s32 %s57, 1
      %p61 = scmp.eq.s32.totalorder %s23, 1
      %p62 = scmp.ne.s32.totalorder %s57, %s59
      %p63 = scmp.eq.s32.totalorder %s23, 0
      %p64 = por %p62, %p63
      %p65 = scmp.ne.s32.totalorder %s57, %s59
      %p66 = scmp.eq.s32.totalorder %s28, 1
      %p67 = por %p65, %p66
      %p68 = scmp.ne.s32.totalorder %s59, %s60
      %p69 = scmp.eq.s32.totalorder %s28, 0
      %p70 = por %p68, %p69
      %p71 = scmp.ne.s32.totalorder %s59, %s60
      %p72 = scmp.eq.s32.totalorder %s29, 1
      %p73 = por %p71, %p72
      %p75 = scmp.ne.s32.totalorder %s60, %s74
      %p76 = scmp.eq.s32.totalorder %s29, 0
      %p77 = por %p75, %p76
      %s79 = sadd.s32 %s78, 1
      %p82 = scmp.eq.s32.totalorder %s23, 1
      %p83 = scmp.ne.s32.totalorder %s78, %s80
      %p84 = scmp.eq.s32.totalorder %s23, 0
      %p85 = por %p83, %p84
      %p86 = scmp.ne.s32.totalorder %s78, %s80
      %p87 = scmp.eq.s32.totalorder %s28, 1
      %p88 = por %p86, %p87
      %p89 = scmp.ne.s32.totalorder %s80, %s81
      %p90 = scmp.eq.s32.totalorder %s28, 0
      %p91 = por %p89, %p90
      %p92 = scmp.ne.s32.totalorder %s80, %s81
      %p93 = scmp.eq.s32.totalorder %s29, 1
      %p94 = por %p92, %p93
      %p96 = scmp.ne.s32.totalorder %s81, %s95
      %p97 = scmp.eq.s32.totalorder %s29, 0
      %p98 = por %p96, %p97
      %s100 = sadd.s32 %s99, 1
      %p103 = scmp.eq.s32.totalorder %s23, 1
      %p104 = scmp.ne.s32.totalorder %s99, %s101
      %p105 = scmp.eq.s32.totalorder %s23, 0
      %p106 = por %p104, %p105
      %p107 = scmp.ne.s32.totalorder %s99, %s101
      %p108 = scmp.eq.s32.totalorder %s28, 1
      %p109 = por %p107, %p108
      %p110 = scmp.ne.s32.totalorder %s101, %s102
      %p111 = scmp.eq.s32.totalorder %s28, 0
      %p112 = por %p110, %p111
      %p113 = scmp.ne.s32.totalorder %s101, %s102
      %p114 = scmp.eq.s32.totalorder %s29, 1
      %p115 = por %p113, %p114
      %p117 = scmp.ne.s32.totalorder %s102, %s116
      %p118 = scmp.eq.s32.totalorder %s29, 0
      %p119 = por %p117, %p118
      %s121 = sadd.s32 %s120, 1
      %p124 = scmp.eq.s32.totalorder %s23, 1
      %p125 = scmp.ne.s32.totalorder %s120, %s122
      %p126 = scmp.eq.s32.totalorder %s23, 0
      %p127 = por %p125, %p126
      %p128 = scmp.ne.s32.totalorder %s120, %s122
      %p129 = scmp.eq.s32.totalorder %s28, 1
      %p130 = por %p128, %p129
      %p131 = scmp.ne.s32.totalorder %s122, %s123
      %p132 = scmp.eq.s32.totalorder %s28, 0
      %p133 = por %p131, %p132
      %p134 = scmp.ne.s32.totalorder %s122, %s123
      %p135 = scmp.eq.s32.totalorder %s29, 1
      %p136 = por %p134, %p135
      %p138 = scmp.ne.s32.totalorder %s123, %s137
      %p139 = scmp.eq.s32.totalorder %s29, 0
      %p140 = por %p138, %p139
      %s142 = sadd.s32 %s141, 1
      %p145 = scmp.eq.s32.totalorder %s23, 1
      %p146 = scmp.ne.s32.totalorder %s141, %s143
      %p147 = scmp.eq.s32.totalorder %s23, 0
      %p148 = por %p146, %p147
      %p149 = scmp.ne.s32.totalorder %s141, %s143
      %p150 = scmp.eq.s32.totalorder %s28, 1
      %p151 = por %p149, %p150
      %p152 = scmp.ne.s32.totalorder %s143, %s144
      %p153 = scmp.eq.s32.totalorder %s28, 0
      %p154 = por %p152, %p153
      %p155 = scmp.ne.s32.totalorder %s143, %s144
      %p156 = scmp.eq.s32.totalorder %s29, 1
      %p157 = por %p155, %p156
      %p159 = scmp.ne.s32.totalorder %s144, %s158
      %p160 = scmp.eq.s32.totalorder %s29, 0
      %p161 = por %p159, %p160
      %s162 = ssub.s32 %s23, %s30
      %p163 = scmp.eq.s32.totalorder %s162, 0
      %s165 = sadd.s32 %s164, 1
      %s166 = scalar_select %p163, %s164, %s165
      %p169 = pneg %p163
      %p170 = scmp.eq.s32.totalorder %s23, 1
      %p171 = por %p169, %p170
      %p172 = scmp.ne.s32.totalorder %s164, %s167
      %p173 = scmp.eq.s32.totalorder %s23, 0
      %p174 = por %p172, %p173
      %p175 = scmp.ne.s32.totalorder %s164, %s167
      %p176 = scmp.eq.s32.totalorder %s28, 1
      %p177 = por %p175, %p176
      %p178 = scmp.ne.s32.totalorder %s167, %s168
      %p179 = scmp.eq.s32.totalorder %s28, 0
      %p180 = por %p178, %p179
      %p181 = scmp.ne.s32.totalorder %s167, %s168
      %p182 = scmp.eq.s32.totalorder %s29, 1
      %p183 = por %p181, %p182
      %p185 = scmp.ne.s32.totalorder %s168, %s184
      %p186 = scmp.eq.s32.totalorder %s29, 0
      %p187 = por %p185, %p186
      %p188 = scmp.le.s32.totalorder 1, %s23
      %p189 = scmp.lt.s32.totalorder %s23, 3
      %p190 = pnand %p188, %p189
      %p191 = pneg %p190
      // Predicated region
      $region9: #{tpu_custom_call.1} parent=5 // pred_check
        _
      $region10: #{tpu_custom_call.1} parent=5 // pred_check_branch
        %193 = sbr.rel (%p190) target = $region12
      $region11: #{tpu_custom_call.1} parent=5 // pred_region
        %s194 = ssub.s32 %s23, 1
        // Predicated region
        $region13: #{tpu_custom_call.1} parent=11 // pred_check
          %p195 = pneg %p70
        $region14: #{tpu_custom_call.1} parent=11 // pred_check_branch
          %197 = sbr.rel (%p195) target = $region16
        $region15: #{tpu_custom_call.1} parent=11 // pred_region
          _
        $region16: #{tpu_custom_call.1} parent=11 // pred_fallthru
          _
        // Predicated region
        $region17: #{tpu_custom_call.1} parent=11 // pred_check
          %p198 = pneg %p91
        $region18: #{tpu_custom_call.1} parent=11 // pred_check_branch
          %200 = sbr.rel (%p198) target = $region20
        $region19: #{tpu_custom_call.1} parent=11 // pred_region
          _
        $region20: #{tpu_custom_call.1} parent=11 // pred_fallthru
          _
        // Predicated region
        $region21: #{tpu_custom_call.1} parent=11 // pred_check
          %p201 = pneg %p112
        $region22: #{tpu_custom_call.1} parent=11 // pred_check_branch
          %203 = sbr.rel (%p201) target = $region24
        $region23: #{tpu_custom_call.1} parent=11 // pred_region
          _
        $region24: #{tpu_custom_call.1} parent=11 // pred_fallthru
          _
        // Predicated region
        $region25: #{tpu_custom_call.1} parent=11 // pred_check
          %p204 = pneg %p133
        $region26: #{tpu_custom_call.1} parent=11 // pred_check_branch
          %206 = sbr.rel (%p204) target = $region28
        $region27: #{tpu_custom_call.1} parent=11 // pred_region
          _
        $region28: #{tpu_custom_call.1} parent=11 // pred_fallthru
          _
        // Predicated region
        $region29: #{tpu_custom_call.1} parent=11 // pred_check
          %p207 = pneg %p154
        $region30: #{tpu_custom_call.1} parent=11 // pred_check_branch
          %209 = sbr.rel (%p207) target = $region32
        $region31: #{tpu_custom_call.1} parent=11 // pred_region
          _
        $region32: #{tpu_custom_call.1} parent=11 // pred_fallthru
          _
      $region12: #{tpu_custom_call.1} parent=5 // pred_fallthru
        _
      %p210 = scmp.lt.s32.totalorder %s23, 2
      // Predicated region
      $region33: #{tpu_custom_call.1} parent=5 // pred_check
        %p211 = pneg %p210
      $region34: #{tpu_custom_call.1} parent=5 // pred_check_branch
        %213 = sbr.rel (%p211) target = $region36
      $region35: #{tpu_custom_call.1} parent=5 // pred_region
        // Predicated region
        $region37: #{tpu_custom_call.1} parent=35 // pred_check
          %p214 = pneg %p43
        $region38: #{tpu_custom_call.1} parent=35 // pred_check_branch
          %216 = sbr.rel (%p214) target = $region40
        $region39: #{tpu_custom_call.1} parent=35 // pred_region
          %s217 = sand.u32 %s33, 1
          %s218 = scalar_lea.sflag [#allocation5], %s217
          %s219 = sand.u32 %s33, 1
          %s220 = smul.addr %s219, 8
          %s221 = scalar_lea.vmem [#allocation4], %s220
          %s223 = ssub.s32 128, 128
          %224 = vsyncadd %s218, %s223
          %s225 = smul.addr %s23, 128
          %s226 = scalar_lea.hbm %s1, %s225
          %s228 = sshll.u32 %s221, 4
          %s229 = int_to_ptr.vmem [resolvable:$true] %s228
          %231 = dma.hbm_to_vmem [thread:$0]  %s226, 128, %s229, %s218
        $region40: #{tpu_custom_call.1} parent=35 // pred_fallthru
          _
      $region36: #{tpu_custom_call.1} parent=5 // pred_fallthru
        _
      %p232 = scmp.le.s32.totalorder 1, %s23
      %p233 = scmp.lt.s32.totalorder %s23, 3
      %p234 = pnand %p232, %p233
      %p235 = pneg %p234
      // Predicated region
      $region41: #{tpu_custom_call.1} parent=5 // pred_check
        _
      $region42: #{tpu_custom_call.1} parent=5 // pred_check_branch
        %237 = sbr.rel (%p234) target = $region44
      $region43: #{tpu_custom_call.1} parent=5 // pred_region
        %s238 = ssub.s32 %s23, 1
        %s239 = sand.u32 %s36, 1
        %s240 = scalar_lea.sflag [#allocation5], %s239
        %s241 = sand.u32 %s36, 1
        %s242 = smul.addr %s241, 8
        %s243 = scalar_lea.vmem [#allocation4], %s242
        // Predicated region
        $region45: #{tpu_custom_call.1} parent=43 // pred_check
          %p244 = pneg %p49
        $region46: #{tpu_custom_call.1} parent=43 // pred_check_branch
          %246 = sbr.rel (%p244) target = $region48
        $region47: #{tpu_custom_call.1} parent=43 // pred_region
          %247 = dma.done %s240, 128
        $region48: #{tpu_custom_call.1} parent=43 // pred_fallthru
          _
        %s248 = sand.u32 %s36, 1
        %s249 = scalar_lea.sflag [#allocation5], %s248
        %s250 = sand.u32 %s36, 1
        %s251 = smul.addr %s250, 8
        %s252 = scalar_lea.vmem [#allocation4], %s251
        %p253 = pneg %p49
        %p254 = pneg %p46
        %p255 = pneg %p70
        %p256 = pneg %p67
        %p257 = pneg %p91
        %p258 = pneg %p88
        %p259 = pneg %p112
        %p260 = pneg %p109
        %p261 = pneg %p133
        %p262 = pneg %p130
        %p263 = pneg %p154
        %p264 = pneg %p151
        %p265 = pneg %p180
        %p266 = pneg %p177
        %s267 = sand.u32 %s167, 1
        %s268 = scalar_lea.sflag [#allocation6], %s267
        %s269 = sand.u32 %s167, 1
        %s270 = smul.addr %s269, 8
        %s271 = scalar_lea.vmem [#allocation7], %s270
        %s272 = sld [smem:[#allocation3 + %s28]]
        %v273 = vld [vmem:[%s243] sm:$0xff]
        %v274 = vld [vmem:[%s6] sm:$0xff]
        %v275 = vld [vmem:[%s2] sm:$0xff]
        %v276 = vld [vmem:[%s2 + $0x8] sm:$0xff]
        %v277 = vld [vmem:[%s2 + $0x10] sm:$0xff]
        %v278 = vld [vmem:[%s2 + $0x18] sm:$0xff]
        %v279 = vlaneseq
        %v280 = vshrl.u32 %v279, 7
        %v281 = vsub.s32 0, %v280
        %v282 = vrot.slane %v274, %v281
        %vm283 = vcmask 261120
        %v285 = vsel %vm283, %v273, 0
        %287 = vmatprep.subr.mxu0 0.0
        %288 = vmatpush1.msra.mxu0 %v275
        %289 = vmatprep.subr.mxu0 0.0
        %290 = vmatpush1.msra.mxu0 %v276
        %291 = vmatprep.subr.mxu0 0.0
        %292 = vmatpush1.msra.mxu0 %v277
        %293 = vmatprep.subr.mxu0 0.0
        %294 = vmatpush1.msra.mxu0 %v278
        %295 = vmatprep.subr.mxu0 0.0
        %296 = vmatpush1.msra.mxu0 0.0
        %297 = vmatprep.subr.mxu0 0.0
        %298 = vmatpush1.msra.mxu0 0.0
        %299 = vmatprep.subr.mxu0 0.0
        %300 = vmatpush1.msra.mxu0 0.0
        %301 = vmatprep.subr.mxu0 0.0
        %302 = vmatpush1.msra.mxu0 0.0
        %303 = vmatprep.subr.mxu0 0.0
        %304 = vmatpush1.msra.mxu0 0.0
        %305 = vmatprep.subr.mxu0 0.0
        %306 = vmatpush1.msra.mxu0 0.0
        %307 = vmatprep.subr.mxu0 0.0
        %308 = vmatpush1.msra.mxu0 0.0
        %309 = vmatprep.subr.mxu0 0.0
        %310 = vmatpush1.msra.mxu0 0.0
        %311 = vmatprep.subr.mxu0 0.0
        %312 = vmatpush1.msra.mxu0 0.0
        %313 = vmatprep.subr.mxu0 0.0
        %314 = vmatpush1.msra.mxu0 0.0
        %315 = vmatprep.subr.mxu0 0.0
        %316 = vmatpush1.msra.mxu0 0.0
        %317 = vmatprep.subr.mxu0 0.0
        %318 = vmatpush1.msra.mxu0 0.0
        %319 = vmatprep.subr.mxu0 0.0
        %320 = vmatpush1.msra.mxu0 0.0
        %321 = vmatprep.subr.mxu0 0.0
        %322 = vmatpush1.msra.mxu0 0.0
        %323 = vmatprep.subr.mxu0 0.0
        %324 = vmatpush1.msra.mxu0 0.0
        %325 = vmatprep.subr.mxu0 0.0
        %326 = vmatpush1.msra.mxu0 0.0
        %327 = vmatprep.subr.mxu0 0.0
        %328 = vmatpush1.msra.mxu0 0.0
        %329 = vmatprep.subr.mxu0 0.0
        %330 = vmatpush1.msra.mxu0 0.0
        %331 = vmatprep.subr.mxu0 0.0
        %332 = vmatpush1.msra.mxu0 0.0
        %333 = vmatprep.subr.mxu0 0.0
        %334 = vmatpush1.msra.mxu0 0.0
        %335 = vmatprep.subr.mxu0 0.0
        %336 = vmatpush1.msra.mxu0 0.0
        %337 = vmatprep.subr.mxu0 0.0
        %338 = vmatpush1.msra.mxu0 0.0
        %339 = vmatprep.subr.mxu0 0.0
        %340 = vmatpush1.msra.mxu0 0.0
        %341 = vmatprep.subr.mxu0 0.0
        %342 = vmatpush1.msra.mxu0 0.0
        %343 = vmatprep.subr.mxu0 0.0
        %344 = vmatpush1.msra.mxu0 0.0
        %345 = vmatprep.subr.mxu0 0.0
        %346 = vmatpush1.msra.mxu0 0.0
        %347 = vmatprep.subr.mxu0 0.0
        %348 = vmatpush1.msra.mxu0 0.0
        %349 = vmatprep.subr.mxu0 0.0
        %350 = vmatpush1.msra.mxu0 0.0
        %351 = vmatprep.mubr.f32.mxu0 0.0
        %352 = vmatmul.mubr.f32.gmra.mrb[0].mxu0 %v285
        %v353 = vpop.f32.mrb[0].mxu0
        %v354 = vadd.f32 %v282, %v353
        %v355 = vpop.f32.mrb[0].mxu0
        %356 = vdwg.mxu0
        %v357 = vlaneseq
        %v358 = vand.u32 %v357, 127
        %v359 = vstv %s272
        %vm360 = vcmp.lt.s32.totalorder %v358, %v359
        %362 = vrot.lane.b32.xlu0 %v354, 96
        %v363 = vpop.permute.xlu0 %362
        %vm364 = vcmask 64512
        %v365 = vsel %vm364, %v354, 0
        %v367 = vsel %vm364, %v363, 0
        %369 = vmatprep.subr.mxu0 0.0
        %370 = vmatpush1.xpose.msra.mxu0 %v367
        %371 = vmatprep.subr.mxu0 0.0
        %372 = vmatpush1.xpose.msra.mxu0 0.0
        %373 = vmatprep.subr.mxu0 0.0
        %374 = vmatpush1.xpose.msra.mxu0 0.0
        %375 = vmatprep.subr.mxu0 0.0
        %376 = vmatpush1.xpose.msra.mxu0 0.0
        %377 = vmatprep.subr.mxu0 0.0
        %378 = vmatpush1.xpose.msra.mxu0 0.0
        %379 = vmatprep.subr.mxu0 0.0
        %380 = vmatpush1.xpose.msra.mxu0 0.0
        %381 = vmatprep.subr.mxu0 0.0
        %382 = vmatpush1.xpose.msra.mxu0 0.0
        %383 = vmatprep.subr.mxu0 0.0
        %384 = vmatpush1.xpose.msra.mxu0 0.0
        %385 = vmatprep.subr.mxu0 0.0
        %386 = vmatpush1.xpose.msra.mxu0 0.0
        %387 = vmatprep.subr.mxu0 0.0
        %388 = vmatpush1.xpose.msra.mxu0 0.0
        %389 = vmatprep.subr.mxu0 0.0
        %390 = vmatpush1.xpose.msra.mxu0 0.0
        %391 = vmatprep.subr.mxu0 0.0
        %392 = vmatpush1.xpose.msra.mxu0 0.0
        %393 = vmatprep.subr.mxu0 0.0
        %394 = vmatpush1.xpose.msra.mxu0 0.0
        %395 = vmatprep.subr.mxu0 0.0
        %396 = vmatpush1.xpose.msra.mxu0 0.0
        %397 = vmatprep.subr.mxu0 0.0
        %398 = vmatpush1.xpose.msra.mxu0 0.0
        %399 = vmatprep.subr.mxu0 0.0
        %400 = vmatpush1.xpose.msra.mxu0 0.0
        %401 = vmatprep.subr.mxu0 0.0
        %402 = vmatpush1.xpose.msra.mxu0 0.0
        %403 = vmatprep.subr.mxu0 0.0
        %404 = vmatpush1.xpose.msra.mxu0 0.0
        %405 = vmatprep.subr.mxu0 0.0
        %406 = vmatpush1.xpose.msra.mxu0 0.0
        %407 = vmatprep.subr.mxu0 0.0
        %408 = vmatpush1.xpose.msra.mxu0 0.0
        %409 = vmatprep.subr.mxu0 0.0
        %410 = vmatpush1.xpose.msra.mxu0 0.0
        %411 = vmatprep.subr.mxu0 0.0
        %412 = vmatpush1.xpose.msra.mxu0 0.0
        %413 = vmatprep.subr.mxu0 0.0
        %414 = vmatpush1.xpose.msra.mxu0 0.0
        %415 = vmatprep.subr.mxu0 0.0
        %416 = vmatpush1.xpose.msra.mxu0 0.0
        %417 = vmatprep.subr.mxu0 0.0
        %418 = vmatpush1.xpose.msra.mxu0 0.0
        %419 = vmatprep.subr.mxu0 0.0
        %420 = vmatpush1.xpose.msra.mxu0 0.0
        %421 = vmatprep.subr.mxu0 0.0
        %422 = vmatpush1.xpose.msra.mxu0 0.0
        %423 = vmatprep.subr.mxu0 0.0
        %424 = vmatpush1.xpose.msra.mxu0 0.0
        %425 = vmatprep.subr.mxu0 0.0
        %426 = vmatpush1.xpose.msra.mxu0 0.0
        %427 = vmatprep.subr.mxu0 0.0
        %428 = vmatpush1.xpose.msra.mxu0 0.0
        %429 = vmatprep.subr.mxu0 0.0
        %430 = vmatpush1.xpose.msra.mxu0 0.0
        %431 = vmatprep.subr.mxu0 0.0
        %432 = vmatpush1.xpose.msra.mxu0 0.0
        %433 = vmatprep.mubr.f32.mxu0 0.0
        %434 = vmatmul.mubr.f32.gmra.mrb[0].mxu0 %v365
        %v435 = vpop.f32.mrb[0].mxu0
        %v436 = vadd.f32 0.0, %v435
        %v437 = vpop.f32.mrb[0].mxu0
        %438 = vdwg.mxu0
        %v439 = vmul.f32 %v436, 0.35355338
        %v440 = vsel %vm360, 1, 0
        %vm441 = vcmp.eq.s32.totalorder %v440, 1
        %v442 = vsel %vm441, %v439, -1e+09
        %v443 = vsel %vm364, %v442, -inf
        %444 = vmax.xlane.f32.xlu0 %v443
        %v445 = vpop.xlane.xlu0 %444
        %v446 = vsub.f32 %v442, %v445
        %v447 = vmul.f32 %v446, 1.442695
        %v448 = vpow.pop %v447
        %v449 = vsel %vm364, %v448, 0.0
        %450 = vadd.xlane.f32.xlu0 %v449
        %v451 = vpop.xlane.xlu0 %450
        %v452 = vrcp.pop %v451
        %v453 = vmul.f32 %v448, %v452
        %454 = vrot.lane.b32.xlu0 %v354, 64
        %v455 = vpop.permute.xlu0 %454
        %v458 = vsel %vm364, %v453, 0
        %460 = vmatprep.subr.mxu0 0.0
        %461 = vmatpush1.msra.mxu0 %v455
        %462 = vmatprep.subr.mxu0 0.0
        %463 = vmatpush1.msra.mxu0 0.0
        %464 = vmatprep.subr.mxu0 0.0
        %465 = vmatpush1.msra.mxu0 0.0
        %466 = vmatprep.subr.mxu0 0.0
        %467 = vmatpush1.msra.mxu0 0.0
        %468 = vmatprep.subr.mxu0 0.0
        %469 = vmatpush1.msra.mxu0 0.0
        %470 = vmatprep.subr.mxu0 0.0
        %471 = vmatpush1.msra.mxu0 0.0
        %472 = vmatprep.subr.mxu0 0.0
        %473 = vmatpush1.msra.mxu0 0.0
        %474 = vmatprep.subr.mxu0 0.0
        %475 = vmatpush1.msra.mxu0 0.0
        %476 = vmatprep.subr.mxu0 0.0
        %477 = vmatpush1.msra.mxu0 0.0
        %478 = vmatprep.subr.mxu0 0.0
        %479 = vmatpush1.msra.mxu0 0.0
        %480 = vmatprep.subr.mxu0 0.0
        %481 = vmatpush1.msra.mxu0 0.0
        %482 = vmatprep.subr.mxu0 0.0
        %483 = vmatpush1.msra.mxu0 0.0
        %484 = vmatprep.subr.mxu0 0.0
        %485 = vmatpush1.msra.mxu0 0.0
        %486 = vmatprep.subr.mxu0 0.0
        %487 = vmatpush1.msra.mxu0 0.0
        %488 = vmatprep.subr.mxu0 0.0
        %489 = vmatpush1.msra.mxu0 0.0
        %490 = vmatprep.subr.mxu0 0.0
        %491 = vmatpush1.msra.mxu0 0.0
        %492 = vmatprep.subr.mxu0 0.0
        %493 = vmatpush1.msra.mxu0 0.0
        %494 = vmatprep.subr.mxu0 0.0
        %495 = vmatpush1.msra.mxu0 0.0
        %496 = vmatprep.subr.mxu0 0.0
        %497 = vmatpush1.msra.mxu0 0.0
        %498 = vmatprep.subr.mxu0 0.0
        %499 = vmatpush1.msra.mxu0 0.0
        %500 = vmatprep.subr.mxu0 0.0
        %501 = vmatpush1.msra.mxu0 0.0
        %502 = vmatprep.subr.mxu0 0.0
        %503 = vmatpush1.msra.mxu0 0.0
        %504 = vmatprep.subr.mxu0 0.0
        %505 = vmatpush1.msra.mxu0 0.0
        %506 = vmatprep.subr.mxu0 0.0
        %507 = vmatpush1.msra.mxu0 0.0
        %508 = vmatprep.subr.mxu0 0.0
        %509 = vmatpush1.msra.mxu0 0.0
        %510 = vmatprep.subr.mxu0 0.0
        %511 = vmatpush1.msra.mxu0 0.0
        %512 = vmatprep.subr.mxu0 0.0
        %513 = vmatpush1.msra.mxu0 0.0
        %514 = vmatprep.subr.mxu0 0.0
        %515 = vmatpush1.msra.mxu0 0.0
        %516 = vmatprep.subr.mxu0 0.0
        %517 = vmatpush1.msra.mxu0 0.0
        %518 = vmatprep.subr.mxu0 0.0
        %519 = vmatpush1.msra.mxu0 0.0
        %520 = vmatprep.subr.mxu0 0.0
        %521 = vmatpush1.msra.mxu0 0.0
        %522 = vmatprep.subr.mxu0 0.0
        %523 = vmatpush1.msra.mxu0 0.0
        %524 = vmatprep.mubr.f32.mxu0 0.0
        %525 = vmatmul.mubr.f32.gmra.mrb[0].mxu0 %v458
        %v526 = vpop.f32.mrb[0].mxu0
        %v527 = vadd.f32 0.0, %v526
        %v528 = vpop.f32.mrb[0].mxu0
        %529 = vdwg.mxu0
        %530 = vrot.lane.b32.xlu0 %v354, 120
        %v531 = vpop.permute.xlu0 %530
        %532 = vrot.lane.b32.xlu0 %v354, 88
        %v533 = vpop.permute.xlu0 %532
        %v534 = vsel %vm364, %v531, 0
        %v536 = vsel %vm364, %v533, 0
        %538 = vmatprep.subr.mxu0 0.0
        %539 = vmatpush1.xpose.msra.mxu0 %v536
        %540 = vmatprep.subr.mxu0 0.0
        %541 = vmatpush1.xpose.msra.mxu0 0.0
        %542 = vmatprep.subr.mxu0 0.0
        %543 = vmatpush1.xpose.msra.mxu0 0.0
        %544 = vmatprep.subr.mxu0 0.0
        %545 = vmatpush1.xpose.msra.mxu0 0.0
        %546 = vmatprep.subr.mxu0 0.0
        %547 = vmatpush1.xpose.msra.mxu0 0.0
        %548 = vmatprep.subr.mxu0 0.0
        %549 = vmatpush1.xpose.msra.mxu0 0.0
        %550 = vmatprep.subr.mxu0 0.0
        %551 = vmatpush1.xpose.msra.mxu0 0.0
        %552 = vmatprep.subr.mxu0 0.0
        %553 = vmatpush1.xpose.msra.mxu0 0.0
        %554 = vmatprep.subr.mxu0 0.0
        %555 = vmatpush1.xpose.msra.mxu0 0.0
        %556 = vmatprep.subr.mxu0 0.0
        %557 = vmatpush1.xpose.msra.mxu0 0.0
        %558 = vmatprep.subr.mxu0 0.0
        %559 = vmatpush1.xpose.msra.mxu0 0.0
        %560 = vmatprep.subr.mxu0 0.0
        %561 = vmatpush1.xpose.msra.mxu0 0.0
        %562 = vmatprep.subr.mxu0 0.0
        %563 = vmatpush1.xpose.msra.mxu0 0.0
        %564 = vmatprep.subr.mxu0 0.0
        %565 = vmatpush1.xpose.msra.mxu0 0.0
        %566 = vmatprep.subr.mxu0 0.0
        %567 = vmatpush1.xpose.msra.mxu0 0.0
        %568 = vmatprep.subr.mxu0 0.0
        %569 = vmatpush1.xpose.msra.mxu0 0.0
        %570 = vmatprep.subr.mxu0 0.0
        %571 = vmatpush1.xpose.msra.mxu0 0.0
        %572 = vmatprep.subr.mxu0 0.0
        %573 = vmatpush1.xpose.msra.mxu0 0.0
        %574 = vmatprep.subr.mxu0 0.0
        %575 = vmatpush1.xpose.msra.mxu0 0.0
        %576 = vmatprep.subr.mxu0 0.0
        %577 = vmatpush1.xpose.msra.mxu0 0.0
        %578 = vmatprep.subr.mxu0 0.0
        %579 = vmatpush1.xpose.msra.mxu0 0.0
        %580 = vmatprep.subr.mxu0 0.0
        %581 = vmatpush1.xpose.msra.mxu0 0.0
        %582 = vmatprep.subr.mxu0 0.0
        %583 = vmatpush1.xpose.msra.mxu0 0.0
        %584 = vmatprep.subr.mxu0 0.0
        %585 = vmatpush1.xpose.msra.mxu0 0.0
        %586 = vmatprep.subr.mxu0 0.0
        %587 = vmatpush1.xpose.msra.mxu0 0.0
        %588 = vmatprep.subr.mxu0 0.0
        %589 = vmatpush1.xpose.msra.mxu0 0.0
        %590 = vmatprep.subr.mxu0 0.0
        %591 = vmatpush1.xpose.msra.mxu0 0.0
        %592 = vmatprep.subr.mxu0 0.0
        %593 = vmatpush1.xpose.msra.mxu0 0.0
        %594 = vmatprep.subr.mxu0 0.0
        %595 = vmatpush1.xpose.msra.mxu0 0.0
        %596 = vmatprep.subr.mxu0 0.0
        %597 = vmatpush1.xpose.msra.mxu0 0.0
        %598 = vmatprep.subr.mxu0 0.0
        %599 = vmatpush1.xpose.msra.mxu0 0.0
        %600 = vmatprep.subr.mxu0 0.0
        %601 = vmatpush1.xpose.msra.mxu0 0.0
        %602 = vmatprep.mubr.f32.mxu0 0.0
        %603 = vmatmul.mubr.f32.gmra.mrb[0].mxu0 %v534
        %v604 = vpop.f32.mrb[0].mxu0
        %v605 = vadd.f32 0.0, %v604
        %v606 = vpop.f32.mrb[0].mxu0
        %607 = vdwg.mxu0
        %v608 = vmul.f32 %v605, 0.35355338
        %v609 = vsel %vm441, %v608, -1e+09
        %v610 = vsel %vm364, %v609, -inf
        %611 = vmax.xlane.f32.xlu0 %v610
        %v612 = vpop.xlane.xlu0 %611
        %v613 = vsub.f32 %v609, %v612
        %v614 = vmul.f32 %v613, 1.442695
        %v615 = vpow.pop %v614
        %v616 = vsel %vm364, %v615, 0.0
        %617 = vadd.xlane.f32.xlu0 %v616
        %v618 = vpop.xlane.xlu0 %617
        %v619 = vrcp.pop %v618
        %v620 = vmul.f32 %v615, %v619
        %621 = vrot.lane.b32.xlu0 %v354, 56
        %v622 = vpop.permute.xlu0 %621
        %v625 = vsel %vm364, %v620, 0
        %627 = vmatprep.subr.mxu0 0.0
        %628 = vmatpush1.msra.mxu0 %v622
        %629 = vmatprep.subr.mxu0 0.0
        %630 = vmatpush1.msra.mxu0 0.0
        %631 = vmatprep.subr.mxu0 0.0
        %632 = vmatpush1.msra.mxu0 0.0
        %633 = vmatprep.subr.mxu0 0.0
        %634 = vmatpush1.msra.mxu0 0.0
        %635 = vmatprep.subr.mxu0 0.0
        %636 = vmatpush1.msra.mxu0 0.0
        %637 = vmatprep.subr.mxu0 0.0
        %638 = vmatpush1.msra.mxu0 0.0
        %639 = vmatprep.subr.mxu0 0.0
        %640 = vmatpush1.msra.mxu0 0.0
        %641 = vmatprep.subr.mxu0 0.0
        %642 = vmatpush1.msra.mxu0 0.0
        %643 = vmatprep.subr.mxu0 0.0
        %644 = vmatpush1.msra.mxu0 0.0
        %645 = vmatprep.subr.mxu0 0.0
        %646 = vmatpush1.msra.mxu0 0.0
        %647 = vmatprep.subr.mxu0 0.0
        %648 = vmatpush1.msra.mxu0 0.0
        %649 = vmatprep.subr.mxu0 0.0
        %650 = vmatpush1.msra.mxu0 0.0
        %651 = vmatprep.subr.mxu0 0.0
        %652 = vmatpush1.msra.mxu0 0.0
        %653 = vmatprep.subr.mxu0 0.0
        %654 = vmatpush1.msra.mxu0 0.0
        %655 = vmatprep.subr.mxu0 0.0
        %656 = vmatpush1.msra.mxu0 0.0
        %657 = vmatprep.subr.mxu0 0.0
        %658 = vmatpush1.msra.mxu0 0.0
        %659 = vmatprep.subr.mxu0 0.0
        %660 = vmatpush1.msra.mxu0 0.0
        %661 = vmatprep.subr.mxu0 0.0
        %662 = vmatpush1.msra.mxu0 0.0
        %663 = vmatprep.subr.mxu0 0.0
        %664 = vmatpush1.msra.mxu0 0.0
        %665 = vmatprep.subr.mxu0 0.0
        %666 = vmatpush1.msra.mxu0 0.0
        %667 = vmatprep.subr.mxu0 0.0
        %668 = vmatpush1.msra.mxu0 0.0
        %669 = vmatprep.subr.mxu0 0.0
        %670 = vmatpush1.msra.mxu0 0.0
        %671 = vmatprep.subr.mxu0 0.0
        %672 = vmatpush1.msra.mxu0 0.0
        %673 = vmatprep.subr.mxu0 0.0
        %674 = vmatpush1.msra.mxu0 0.0
        %675 = vmatprep.subr.mxu0 0.0
        %676 = vmatpush1.msra.mxu0 0.0
        %677 = vmatprep.subr.mxu0 0.0
        %678 = vmatpush1.msra.mxu0 0.0
        %679 = vmatprep.subr.mxu0 0.0
        %680 = vmatpush1.msra.mxu0 0.0
        %681 = vmatprep.subr.mxu0 0.0
        %682 = vmatpush1.msra.mxu0 0.0
        %683 = vmatprep.subr.mxu0 0.0
        %684 = vmatpush1.msra.mxu0 0.0
        %685 = vmatprep.subr.mxu0 0.0
        %686 = vmatpush1.msra.mxu0 0.0
        %687 = vmatprep.subr.mxu0 0.0
        %688 = vmatpush1.msra.mxu0 0.0
        %689 = vmatprep.subr.mxu0 0.0
        %690 = vmatpush1.msra.mxu0 0.0
        %691 = vmatprep.mubr.f32.mxu0 0.0
        %692 = vmatmul.mubr.f32.gmra.mrb[0].mxu0 %v625
        %v693 = vpop.f32.mrb[0].mxu0
        %v694 = vadd.f32 0.0, %v693
        %v695 = vpop.f32.mrb[0].mxu0
        %696 = vdwg.mxu0
        %697 = vrot.lane.b32.xlu0 %v354, 112
        %v698 = vpop.permute.xlu0 %697
        %699 = vrot.lane.b32.xlu0 %v354, 80
        %v700 = vpop.permute.xlu0 %699
        %v701 = vsel %vm364, %v698, 0
        %v703 = vsel %vm364, %v700, 0
        %705 = vmatprep.subr.mxu0 0.0
        %706 = vmatpush1.xpose.msra.mxu0 %v703
        %707 = vmatprep.subr.mxu0 0.0
        %708 = vmatpush1.xpose.msra.mxu0 0.0
        %709 = vmatprep.subr.mxu0 0.0
        %710 = vmatpush1.xpose.msra.mxu0 0.0
        %711 = vmatprep.subr.mxu0 0.0
        %712 = vmatpush1.xpose.msra.mxu0 0.0
        %713 = vmatprep.subr.mxu0 0.0
        %714 = vmatpush1.xpose.msra.mxu0 0.0
        %715 = vmatprep.subr.mxu0 0.0
        %716 = vmatpush1.xpose.msra.mxu0 0.0
        %717 = vmatprep.subr.mxu0 0.0
        %718 = vmatpush1.xpose.msra.mxu0 0.0
        %719 = vmatprep.subr.mxu0 0.0
        %720 = vmatpush1.xpose.msra.mxu0 0.0
        %721 = vmatprep.subr.mxu0 0.0
        %722 = vmatpush1.xpose.msra.mxu0 0.0
        %723 = vmatprep.subr.mxu0 0.0
        %724 = vmatpush1.xpose.msra.mxu0 0.0
        %725 = vmatprep.subr.mxu0 0.0
        %726 = vmatpush1.xpose.msra.mxu0 0.0
        %727 = vmatprep.subr.mxu0 0.0
        %728 = vmatpush1.xpose.msra.mxu0 0.0
        %729 = vmatprep.subr.mxu0 0.0
        %730 = vmatpush1.xpose.msra.mxu0 0.0
        %731 = vmatprep.subr.mxu0 0.0
        %732 = vmatpush1.xpose.msra.mxu0 0.0
        %733 = vmatprep.subr.mxu0 0.0
        %734 = vmatpush1.xpose.msra.mxu0 0.0
        %735 = vmatprep.subr.mxu0 0.0
        %736 = vmatpush1.xpose.msra.mxu0 0.0
        %737 = vmatprep.subr.mxu0 0.0
        %738 = vmatpush1.xpose.msra.mxu0 0.0
        %739 = vmatprep.subr.mxu0 0.0
        %740 = vmatpush1.xpose.msra.mxu0 0.0
        %741 = vmatprep.subr.mxu0 0.0
        %742 = vmatpush1.xpose.msra.mxu0 0.0
        %743 = vmatprep.subr.mxu0 0.0
        %744 = vmatpush1.xpose.msra.mxu0 0.0
        %745 = vmatprep.subr.mxu0 0.0
        %746 = vmatpush1.xpose.msra.mxu0 0.0
        %747 = vmatprep.subr.mxu0 0.0
        %748 = vmatpush1.xpose.msra.mxu0 0.0
        %749 = vmatprep.subr.mxu0 0.0
        %750 = vmatpush1.xpose.msra.mxu0 0.0
        %751 = vmatprep.subr.mxu0 0.0
        %752 = vmatpush1.xpose.msra.mxu0 0.0
        %753 = vmatprep.subr.mxu0 0.0
        %754 = vmatpush1.xpose.msra.mxu0 0.0
        %755 = vmatprep.subr.mxu0 0.0
        %756 = vmatpush1.xpose.msra.mxu0 0.0
        %757 = vmatprep.subr.mxu0 0.0
        %758 = vmatpush1.xpose.msra.mxu0 0.0
        %759 = vmatprep.subr.mxu0 0.0
        %760 = vmatpush1.xpose.msra.mxu0 0.0
        %761 = vmatprep.subr.mxu0 0.0
        %762 = vmatpush1.xpose.msra.mxu0 0.0
        %763 = vmatprep.subr.mxu0 0.0
        %764 = vmatpush1.xpose.msra.mxu0 0.0
        %765 = vmatprep.subr.mxu0 0.0
        %766 = vmatpush1.xpose.msra.mxu0 0.0
        %767 = vmatprep.subr.mxu0 0.0
        %768 = vmatpush1.xpose.msra.mxu0 0.0
        %769 = vmatprep.mubr.f32.mxu0 0.0
        %770 = vmatmul.mubr.f32.gmra.mrb[0].mxu0 %v701
        %v771 = vpop.f32.mrb[0].mxu0
        %v772 = vadd.f32 0.0, %v771
        %v773 = vpop.f32.mrb[0].mxu0
        %774 = vdwg.mxu0
        %v775 = vmul.f32 %v772, 0.35355338
        %v776 = vsel %vm441, %v775, -1e+09
        %v777 = vsel %vm364, %v776, -inf
        %778 = vmax.xlane.f32.xlu0 %v777
        %v779 = vpop.xlane.xlu0 %778
        %v780 = vsub.f32 %v776, %v779
        %v781 = vmul.f32 %v780, 1.442695
        %v782 = vpow.pop %v781
        %v783 = vsel %vm364, %v782, 0.0
        %784 = vadd.xlane.f32.xlu0 %v783
        %v785 = vpop.xlane.xlu0 %784
        %v786 = vrcp.pop %v785
        %v787 = vmul.f32 %v782, %v786
        %788 = vrot.lane.b32.xlu0 %v354, 48
        %v789 = vpop.permute.xlu0 %788
        %v792 = vsel %vm364, %v787, 0
        %794 = vmatprep.subr.mxu0 0.0
        %795 = vmatpush1.msra.mxu0 %v789
        %796 = vmatprep.subr.mxu0 0.0
        %797 = vmatpush1.msra.mxu0 0.0
        %798 = vmatprep.subr.mxu0 0.0
        %799 = vmatpush1.msra.mxu0 0.0
        %800 = vmatprep.subr.mxu0 0.0
        %801 = vmatpush1.msra.mxu0 0.0
        %802 = vmatprep.subr.mxu0 0.0
        %803 = vmatpush1.msra.mxu0 0.0
        %804 = vmatprep.subr.mxu0 0.0
        %805 = vmatpush1.msra.mxu0 0.0
        %806 = vmatprep.subr.mxu0 0.0
        %807 = vmatpush1.msra.mxu0 0.0
        %808 = vmatprep.subr.mxu0 0.0
        %809 = vmatpush1.msra.mxu0 0.0
        %810 = vmatprep.subr.mxu0 0.0
        %811 = vmatpush1.msra.mxu0 0.0
        %812 = vmatprep.subr.mxu0 0.0
        %813 = vmatpush1.msra.mxu0 0.0
        %814 = vmatprep.subr.mxu0 0.0
        %815 = vmatpush1.msra.mxu0 0.0
        %816 = vmatprep.subr.mxu0 0.0
        %817 = vmatpush1.msra.mxu0 0.0
        %818 = vmatprep.subr.mxu0 0.0
        %819 = vmatpush1.msra.mxu0 0.0
        %820 = vmatprep.subr.mxu0 0.0
        %821 = vmatpush1.msra.mxu0 0.0
        %822 = vmatprep.subr.mxu0 0.0
        %823 = vmatpush1.msra.mxu0 0.0
        %824 = vmatprep.subr.mxu0 0.0
        %825 = vmatpush1.msra.mxu0 0.0
        %826 = vmatprep.subr.mxu0 0.0
        %827 = vmatpush1.msra.mxu0 0.0
        %828 = vmatprep.subr.mxu0 0.0
        %829 = vmatpush1.msra.mxu0 0.0
        %830 = vmatprep.subr.mxu0 0.0
        %831 = vmatpush1.msra.mxu0 0.0
        %832 = vmatprep.subr.mxu0 0.0
        %833 = vmatpush1.msra.mxu0 0.0
        %834 = vmatprep.subr.mxu0 0.0
        %835 = vmatpush1.msra.mxu0 0.0
        %836 = vmatprep.subr.mxu0 0.0
        %837 = vmatpush1.msra.mxu0 0.0
        %838 = vmatprep.subr.mxu0 0.0
        %839 = vmatpush1.msra.mxu0 0.0
        %840 = vmatprep.subr.mxu0 0.0
        %841 = vmatpush1.msra.mxu0 0.0
        %842 = vmatprep.subr.mxu0 0.0
        %843 = vmatpush1.msra.mxu0 0.0
        %844 = vmatprep.subr.mxu0 0.0
        %845 = vmatpush1.msra.mxu0 0.0
        %846 = vmatprep.subr.mxu0 0.0
        %847 = vmatpush1.msra.mxu0 0.0
        %848 = vmatprep.subr.mxu0 0.0
        %849 = vmatpush1.msra.mxu0 0.0
        %850 = vmatprep.subr.mxu0 0.0
        %851 = vmatpush1.msra.mxu0 0.0
        %852 = vmatprep.subr.mxu0 0.0
        %853 = vmatpush1.msra.mxu0 0.0
        %854 = vmatprep.subr.mxu0 0.0
        %855 = vmatpush1.msra.mxu0 0.0
        %856 = vmatprep.subr.mxu0 0.0
        %857 = vmatpush1.msra.mxu0 0.0
        %858 = vmatprep.mubr.f32.mxu0 0.0
        %859 = vmatmul.mubr.f32.gmra.mrb[0].mxu0 %v792
        %v860 = vpop.f32.mrb[0].mxu0
        %v861 = vadd.f32 0.0, %v860
        %v862 = vpop.f32.mrb[0].mxu0
        %863 = vdwg.mxu0
        %864 = vrot.lane.b32.xlu0 %v354, 104
        %v865 = vpop.permute.xlu0 %864
        %866 = vrot.lane.b32.xlu0 %v354, 72
        %v867 = vpop.permute.xlu0 %866
        %v868 = vsel %vm364, %v865, 0
        %v870 = vsel %vm364, %v867, 0
        %872 = vmatprep.subr.mxu0 0.0
        %873 = vmatpush1.xpose.msra.mxu0 %v870
        %874 = vmatprep.subr.mxu0 0.0
        %875 = vmatpush1.xpose.msra.mxu0 0.0
        %876 = vmatprep.subr.mxu0 0.0
        %877 = vmatpush1.xpose.msra.mxu0 0.0
        %878 = vmatprep.subr.mxu0 0.0
        %879 = vmatpush1.xpose.msra.mxu0 0.0
        %880 = vmatprep.subr.mxu0 0.0
        %881 = vmatpush1.xpose.msra.mxu0 0.0
        %882 = vmatprep.subr.mxu0 0.0
        %883 = vmatpush1.xpose.msra.mxu0 0.0
        %884 = vmatprep.subr.mxu0 0.0
        %885 = vmatpush1.xpose.msra.mxu0 0.0
        %886 = vmatprep.subr.mxu0 0.0
        %887 = vmatpush1.xpose.msra.mxu0 0.0
        %888 = vmatprep.subr.mxu0 0.0
        %889 = vmatpush1.xpose.msra.mxu0 0.0
        %890 = vmatprep.subr.mxu0 0.0
        %891 = vmatpush1.xpose.msra.mxu0 0.0
        %892 = vmatprep.subr.mxu0 0.0
        %893 = vmatpush1.xpose.msra.mxu0 0.0
        %894 = vmatprep.subr.mxu0 0.0
        %895 = vmatpush1.xpose.msra.mxu0 0.0
        %896 = vmatprep.subr.mxu0 0.0
        %897 = vmatpush1.xpose.msra.mxu0 0.0
        %898 = vmatprep.subr.mxu0 0.0
        %899 = vmatpush1.xpose.msra.mxu0 0.0
        %900 = vmatprep.subr.mxu0 0.0
        %901 = vmatpush1.xpose.msra.mxu0 0.0
        %902 = vmatprep.subr.mxu0 0.0
        %903 = vmatpush1.xpose.msra.mxu0 0.0
        %904 = vmatprep.subr.mxu0 0.0
        %905 = vmatpush1.xpose.msra.mxu0 0.0
        %906 = vmatprep.subr.mxu0 0.0
        %907 = vmatpush1.xpose.msra.mxu0 0.0
        %908 = vmatprep.subr.mxu0 0.0
        %909 = vmatpush1.xpose.msra.mxu0 0.0
        %910 = vmatprep.subr.mxu0 0.0
        %911 = vmatpush1.xpose.msra.mxu0 0.0
        %912 = vmatprep.subr.mxu0 0.0
        %913 = vmatpush1.xpose.msra.mxu0 0.0
        %914 = vmatprep.subr.mxu0 0.0
        %915 = vmatpush1.xpose.msra.mxu0 0.0
        %916 = vmatprep.subr.mxu0 0.0
        %917 = vmatpush1.xpose.msra.mxu0 0.0
        %918 = vmatprep.subr.mxu0 0.0
        %919 = vmatpush1.xpose.msra.mxu0 0.0
        %920 = vmatprep.subr.mxu0 0.0
        %921 = vmatpush1.xpose.msra.mxu0 0.0
        %922 = vmatprep.subr.mxu0 0.0
        %923 = vmatpush1.xpose.msra.mxu0 0.0
        %924 = vmatprep.subr.mxu0 0.0
        %925 = vmatpush1.xpose.msra.mxu0 0.0
        %926 = vmatprep.subr.mxu0 0.0
        %927 = vmatpush1.xpose.msra.mxu0 0.0
        %928 = vmatprep.subr.mxu0 0.0
        %929 = vmatpush1.xpose.msra.mxu0 0.0
        %930 = vmatprep.subr.mxu0 0.0
        %931 = vmatpush1.xpose.msra.mxu0 0.0
        %932 = vmatprep.subr.mxu0 0.0
        %933 = vmatpush1.xpose.msra.mxu0 0.0
        %934 = vmatprep.subr.mxu0 0.0
        %935 = vmatpush1.xpose.msra.mxu0 0.0
        %936 = vmatprep.mubr.f32.mxu0 0.0
        %937 = vmatmul.mubr.f32.gmra.mrb[0].mxu0 %v868
        %v938 = vpop.f32.mrb[0].mxu0
        %v939 = vadd.f32 0.0, %v938
        %v940 = vpop.f32.mrb[0].mxu0
        %941 = vdwg.mxu0
        %v942 = vmul.f32 %v939, 0.35355338
        %v943 = vsel %vm441, %v942, -1e+09
        %v944 = vsel %vm364, %v943, -inf
        %945 = vmax.xlane.f32.xlu0 %v944
        %v946 = vpop.xlane.xlu0 %945
        %v947 = vsub.f32 %v943, %v946
        %v948 = vmul.f32 %v947, 1.442695
        %v949 = vpow.pop %v948
        %v950 = vsel %vm364, %v949, 0.0
        %951 = vadd.xlane.f32.xlu0 %v950
        %v952 = vpop.xlane.xlu0 %951
        %v953 = vrcp.pop %v952
        %v954 = vmul.f32 %v949, %v953
        %955 = vrot.lane.b32.xlu0 %v354, 40
        %v956 = vpop.permute.xlu0 %955
        %v959 = vsel %vm364, %v954, 0
        %961 = vmatprep.subr.mxu0 0.0
        %962 = vmatpush1.msra.mxu0 %v956
        %963 = vmatprep.subr.mxu0 0.0
        %964 = vmatpush1.msra.mxu0 0.0
        %965 = vmatprep.subr.mxu0 0.0
        %966 = vmatpush1.msra.mxu0 0.0
        %967 = vmatprep.subr.mxu0 0.0
        %968 = vmatpush1.msra.mxu0 0.0
        %969 = vmatprep.subr.mxu0 0.0
        %970 = vmatpush1.msra.mxu0 0.0
        %971 = vmatprep.subr.mxu0 0.0
        %972 = vmatpush1.msra.mxu0 0.0
        %973 = vmatprep.subr.mxu0 0.0
        %974 = vmatpush1.msra.mxu0 0.0
        %975 = vmatprep.subr.mxu0 0.0
        %976 = vmatpush1.msra.mxu0 0.0
        %977 = vmatprep.subr.mxu0 0.0
        %978 = vmatpush1.msra.mxu0 0.0
        %979 = vmatprep.subr.mxu0 0.0
        %980 = vmatpush1.msra.mxu0 0.0
        %981 = vmatprep.subr.mxu0 0.0
        %982 = vmatpush1.msra.mxu0 0.0
        %983 = vmatprep.subr.mxu0 0.0
        %984 = vmatpush1.msra.mxu0 0.0
        %985 = vmatprep.subr.mxu0 0.0
        %986 = vmatpush1.msra.mxu0 0.0
        %987 = vmatprep.subr.mxu0 0.0
        %988 = vmatpush1.msra.mxu0 0.0
        %989 = vmatprep.subr.mxu0 0.0
        %990 = vmatpush1.msra.mxu0 0.0
        %991 = vmatprep.subr.mxu0 0.0
        %992 = vmatpush1.msra.mxu0 0.0
        %993 = vmatprep.subr.mxu0 0.0
        %994 = vmatpush1.msra.mxu0 0.0
        %995 = vmatprep.subr.mxu0 0.0
        %996 = vmatpush1.msra.mxu0 0.0
        %997 = vmatprep.subr.mxu0 0.0
        %998 = vmatpush1.msra.mxu0 0.0
        %999 = vmatprep.subr.mxu0 0.0
        %1000 = vmatpush1.msra.mxu0 0.0
        %1001 = vmatprep.subr.mxu0 0.0
        %1002 = vmatpush1.msra.mxu0 0.0
        %1003 = vmatprep.subr.mxu0 0.0
        %1004 = vmatpush1.msra.mxu0 0.0
        %1005 = vmatprep.subr.mxu0 0.0
        %1006 = vmatpush1.msra.mxu0 0.0
        %1007 = vmatprep.subr.mxu0 0.0
        %1008 = vmatpush1.msra.mxu0 0.0
        %1009 = vmatprep.subr.mxu0 0.0
        %1010 = vmatpush1.msra.mxu0 0.0
        %1011 = vmatprep.subr.mxu0 0.0
        %1012 = vmatpush1.msra.mxu0 0.0
        %1013 = vmatprep.subr.mxu0 0.0
        %1014 = vmatpush1.msra.mxu0 0.0
        %1015 = vmatprep.subr.mxu0 0.0
        %1016 = vmatpush1.msra.mxu0 0.0
        %1017 = vmatprep.subr.mxu0 0.0
        %1018 = vmatpush1.msra.mxu0 0.0
        %1019 = vmatprep.subr.mxu0 0.0
        %1020 = vmatpush1.msra.mxu0 0.0
        %1021 = vmatprep.subr.mxu0 0.0
        %1022 = vmatpush1.msra.mxu0 0.0
        %1023 = vmatprep.subr.mxu0 0.0
        %1024 = vmatpush1.msra.mxu0 0.0
        %1025 = vmatprep.mubr.f32.mxu0 0.0
        %1026 = vmatmul.mubr.f32.gmra.mrb[0].mxu0 %v959
        %v1027 = vpop.f32.mrb[0].mxu0
        %v1028 = vadd.f32 0.0, %v1027
        %v1029 = vpop.f32.mrb[0].mxu0
        %1030 = vdwg.mxu0
        %1032 = vrot.lane.b32.xlu0 %v694, 8
        %v1033 = vpop.permute.xlu0 %1032
        %1036 = vrot.lane.b32.xlu0 %v861, 16
        %v1037 = vpop.permute.xlu0 %1036
        %1040 = vrot.lane.b32.xlu0 %v1028, 24
        %v1041 = vpop.permute.xlu0 %1040
        %v1043 = vsel %vm364, %v527, %v1033
        %vm1044 = vcmask 130048
        %v1045 = vsel %vm1044, %v1043, %v1037
        %vm1046 = vcmask 195584
        %v1047 = vsel %vm1046, %v1045, %v1041
        %v1048 = vld [vmem:[%s3] sm:$0xff]
        %v1049 = vld [vmem:[%s3 + $0x8] sm:$0xff]
        %v1050 = vld [vmem:[%s3 + $0x10] sm:$0xff]
        %v1051 = vld [vmem:[%s3 + $0x18] sm:$0xff]
        %v1052 = vlaneseq
        %v1053 = vshrl.u32 %v1052, 7
        %v1054 = vsub.s32 1, %v1053
        %v1055 = vrot.slane %v274, %v1054
        %v1057 = vsel %vm283, %v1047, 0
        %1059 = vmatprep.subr.mxu0 0.0
        %1060 = vmatpush1.msra.mxu0 %v1048
        %1061 = vmatprep.subr.mxu0 0.0
        %1062 = vmatpush1.msra.mxu0 %v1049
        %1063 = vmatprep.subr.mxu0 0.0
        %1064 = vmatpush1.msra.mxu0 %v1050
        %1065 = vmatprep.subr.mxu0 0.0
        %1066 = vmatpush1.msra.mxu0 %v1051
        %1067 = vmatprep.subr.mxu0 0.0
        %1068 = vmatpush1.msra.mxu0 0.0
        %1069 = vmatprep.subr.mxu0 0.0
        %1070 = vmatpush1.msra.mxu0 0.0
        %1071 = vmatprep.subr.mxu0 0.0
        %1072 = vmatpush1.msra.mxu0 0.0
        %1073 = vmatprep.subr.mxu0 0.0
        %1074 = vmatpush1.msra.mxu0 0.0
        %1075 = vmatprep.subr.mxu0 0.0
        %1076 = vmatpush1.msra.mxu0 0.0
        %1077 = vmatprep.subr.mxu0 0.0
        %1078 = vmatpush1.msra.mxu0 0.0
        %1079 = vmatprep.subr.mxu0 0.0
        %1080 = vmatpush1.msra.mxu0 0.0
        %1081 = vmatprep.subr.mxu0 0.0
        %1082 = vmatpush1.msra.mxu0 0.0
        %1083 = vmatprep.subr.mxu0 0.0
        %1084 = vmatpush1.msra.mxu0 0.0
        %1085 = vmatprep.subr.mxu0 0.0
        %1086 = vmatpush1.msra.mxu0 0.0
        %1087 = vmatprep.subr.mxu0 0.0
        %1088 = vmatpush1.msra.mxu0 0.0
        %1089 = vmatprep.subr.mxu0 0.0
        %1090 = vmatpush1.msra.mxu0 0.0
        %1091 = vmatprep.subr.mxu0 0.0
        %1092 = vmatpush1.msra.mxu0 0.0
        %1093 = vmatprep.subr.mxu0 0.0
        %1094 = vmatpush1.msra.mxu0 0.0
        %1095 = vmatprep.subr.mxu0 0.0
        %1096 = vmatpush1.msra.mxu0 0.0
        %1097 = vmatprep.subr.mxu0 0.0
        %1098 = vmatpush1.msra.mxu0 0.0
        %1099 = vmatprep.subr.mxu0 0.0
        %1100 = vmatpush1.msra.mxu0 0.0
        %1101 = vmatprep.subr.mxu0 0.0
        %1102 = vmatpush1.msra.mxu0 0.0
        %1103 = vmatprep.subr.mxu0 0.0
        %1104 = vmatpush1.msra.mxu0 0.0
        %1105 = vmatprep.subr.mxu0 0.0
        %1106 = vmatpush1.msra.mxu0 0.0
        %1107 = vmatprep.subr.mxu0 0.0
        %1108 = vmatpush1.msra.mxu0 0.0
        %1109 = vmatprep.subr.mxu0 0.0
        %1110 = vmatpush1.msra.mxu0 0.0
        %1111 = vmatprep.subr.mxu0 0.0
        %1112 = vmatpush1.msra.mxu0 0.0
        %1113 = vmatprep.subr.mxu0 0.0
        %1114 = vmatpush1.msra.mxu0 0.0
        %1115 = vmatprep.subr.mxu0 0.0
        %1116 = vmatpush1.msra.mxu0 0.0
        %1117 = vmatprep.subr.mxu0 0.0
        %1118 = vmatpush1.msra.mxu0 0.0
        %1119 = vmatprep.subr.mxu0 0.0
        %1120 = vmatpush1.msra.mxu0 0.0
        %1121 = vmatprep.subr.mxu0 0.0
        %1122 = vmatpush1.msra.mxu0 0.0
        %1123 = vmatprep.mubr.f32.mxu0 0.0
        %1124 = vmatmul.mubr.f32.gmra.mrb[0].mxu0 %v1057
        %v1125 = vpop.f32.mrb[0].mxu0
        %v1126 = vadd.f32 %v1055, %v1125
        %v1127 = vpop.f32.mrb[0].mxu0
        %1128 = vdwg.mxu0
        %v1129 = vadd.f32 %v273, %v1126
        %v1130 = vsel %vm283, %v1129, 0.0
        %1131 = vadd.xlane.f32.xlu0 %v1130
        %v1132 = vpop.xlane.xlu0 %1131
        %v1133 = vrcp.pop 32.0
        %v1134 = vmul.f32 %v1132, %v1133
        %v1135 = vsub.f32 %v1129, %v1134
        %v1136 = vmul.f32 %v1135, %v1135
        %v1137 = vsel %vm283, %v1136, 0.0
        %1138 = vadd.xlane.f32.xlu0 %v1137
        %v1139 = vpop.xlane.xlu0 %1138
        %v1140 = vmul.f32 %v1139, 0.032258064
        %v1141 = vlaneseq
        %v1142 = vshrl.u32 %v1141, 7
        %v1143 = vsub.s32 4, %v1142
        %v1144 = vrot.slane %v274, %v1143
        %v1145 = vmul.f32 %v1144, %v1135
        %v1146 = vrsqrt.pop %v1140
        %v1147 = vmul.f32 %v1140, %v1146
        %vm1148 = vcmp.eq.f32.partialorder %v1140, inf
        %v1149 = vsel %vm1148, %v1140, %v1147
        %vm1150 = vcmp.eq.f32.partialorder %v1140, 0.0
        %v1151 = vand.u32 %v1140, 2147483648
        %v1152 = vsel %vm1150, %v1151, %v1149
        %v1153 = vadd.f32 %v1152, 1e-06
        %v1154 = vrcp.pop %v1153
        %v1155 = vmul.f32 %v1145, %v1154
        %v1156 = vlaneseq
        %v1157 = vshrl.u32 %v1156, 7
        %v1158 = vsub.s32 5, %v1157
        %v1159 = vrot.slane %v274, %v1158
        %v1160 = vadd.f32 %v1155, %v1159
        %v1161 = vld [vmem:[%s4] sm:$0xff]
        %v1162 = vld [vmem:[%s4 + $0x8] sm:$0xff]
        %v1163 = vld [vmem:[%s4 + $0x10] sm:$0xff]
        %v1164 = vld [vmem:[%s4 + $0x18] sm:$0xff]
        %v1165 = vlaneseq
        %v1166 = vshrl.u32 %v1165, 7
        %v1167 = vsub.s32 2, %v1166
        %v1168 = vrot.slane %v274, %v1167
        %v1170 = vsel %vm283, %v1160, 0
        %1172 = vmatprep.subr.mxu0 0.0
        %1173 = vmatpush1.msra.mxu0 %v1161
        %1174 = vmatprep.subr.mxu0 0.0
        %1175 = vmatpush1.msra.mxu0 %v1162
        %1176 = vmatprep.subr.mxu0 0.0
        %1177 = vmatpush1.msra.mxu0 %v1163
        %1178 = vmatprep.subr.mxu0 0.0
        %1179 = vmatpush1.msra.mxu0 %v1164
        %1180 = vmatprep.subr.mxu0 0.0
        %1181 = vmatpush1.msra.mxu0 0.0
        %1182 = vmatprep.subr.mxu0 0.0
        %1183 = vmatpush1.msra.mxu0 0.0
        %1184 = vmatprep.subr.mxu0 0.0
        %1185 = vmatpush1.msra.mxu0 0.0
        %1186 = vmatprep.subr.mxu0 0.0
        %1187 = vmatpush1.msra.mxu0 0.0
        %1188 = vmatprep.subr.mxu0 0.0
        %1189 = vmatpush1.msra.mxu0 0.0
        %1190 = vmatprep.subr.mxu0 0.0
        %1191 = vmatpush1.msra.mxu0 0.0
        %1192 = vmatprep.subr.mxu0 0.0
        %1193 = vmatpush1.msra.mxu0 0.0
        %1194 = vmatprep.subr.mxu0 0.0
        %1195 = vmatpush1.msra.mxu0 0.0
        %1196 = vmatprep.subr.mxu0 0.0
        %1197 = vmatpush1.msra.mxu0 0.0
        %1198 = vmatprep.subr.mxu0 0.0
        %1199 = vmatpush1.msra.mxu0 0.0
        %1200 = vmatprep.subr.mxu0 0.0
        %1201 = vmatpush1.msra.mxu0 0.0
        %1202 = vmatprep.subr.mxu0 0.0
        %1203 = vmatpush1.msra.mxu0 0.0
        %1204 = vmatprep.subr.mxu0 0.0
        %1205 = vmatpush1.msra.mxu0 0.0
        %1206 = vmatprep.subr.mxu0 0.0
        %1207 = vmatpush1.msra.mxu0 0.0
        %1208 = vmatprep.subr.mxu0 0.0
        %1209 = vmatpush1.msra.mxu0 0.0
        %1210 = vmatprep.subr.mxu0 0.0
        %1211 = vmatpush1.msra.mxu0 0.0
        %1212 = vmatprep.subr.mxu0 0.0
        %1213 = vmatpush1.msra.mxu0 0.0
        %1214 = vmatprep.subr.mxu0 0.0
        %1215 = vmatpush1.msra.mxu0 0.0
        %1216 = vmatprep.subr.mxu0 0.0
        %1217 = vmatpush1.msra.mxu0 0.0
        %1218 = vmatprep.subr.mxu0 0.0
        %1219 = vmatpush1.msra.mxu0 0.0
        %1220 = vmatprep.subr.mxu0 0.0
        %1221 = vmatpush1.msra.mxu0 0.0
        %1222 = vmatprep.subr.mxu0 0.0
        %1223 = vmatpush1.msra.mxu0 0.0
        %1224 = vmatprep.subr.mxu0 0.0
        %1225 = vmatpush1.msra.mxu0 0.0
        %1226 = vmatprep.subr.mxu0 0.0
        %1227 = vmatpush1.msra.mxu0 0.0
        %1228 = vmatprep.subr.mxu0 0.0
        %1229 = vmatpush1.msra.mxu0 0.0
        %1230 = vmatprep.subr.mxu0 0.0
        %1231 = vmatpush1.msra.mxu0 0.0
        %1232 = vmatprep.subr.mxu0 0.0
        %1233 = vmatpush1.msra.mxu0 0.0
        %1234 = vmatprep.subr.mxu0 0.0
        %1235 = vmatpush1.msra.mxu0 0.0
        %1236 = vmatprep.mubr.f32.mxu0 0.0
        %1237 = vmatmul.mubr.f32.gmra.mrb[0].mxu0 %v1170
        %v1238 = vpop.f32.mrb[0].mxu0
        %v1239 = vadd.f32 %v1168, %v1238
        %v1240 = vpop.f32.mrb[0].mxu0
        %1241 = vdwg.mxu0
        %v1242 = vmax.f32 %v1239, 0.0
        %v1243 = vld [vmem:[%s5] sm:$0xff]
        %v1244 = vld [vmem:[%s5 + $0x8] sm:$0xff]
        %v1245 = vld [vmem:[%s5 + $0x10] sm:$0xff]
        %v1246 = vld [vmem:[%s5 + $0x18] sm:$0xff]
        %v1247 = vld [vmem:[%s5 + $0x20] sm:$0xff]
        %v1248 = vld [vmem:[%s5 + $0x28] sm:$0xff]
        %v1249 = vld [vmem:[%s5 + $0x30] sm:$0xff]
        %v1250 = vld [vmem:[%s5 + $0x38] sm:$0xff]
        %vm1251 = vcmask 523264
        %v1253 = vsel %vm1251, %v1242, 0
        %1255 = vmatprep.subr.mxu0 0.0
        %1256 = vmatpush1.msra.mxu0 %v1243
        %1257 = vmatprep.subr.mxu0 0.0
        %1258 = vmatpush1.msra.mxu0 %v1244
        %1259 = vmatprep.subr.mxu0 0.0
        %1260 = vmatpush1.msra.mxu0 %v1245
        %1261 = vmatprep.subr.mxu0 0.0
        %1262 = vmatpush1.msra.mxu0 %v1246
        %1263 = vmatprep.subr.mxu0 0.0
        %1264 = vmatpush1.msra.mxu0 %v1247
        %1265 = vmatprep.subr.mxu0 0.0
        %1266 = vmatpush1.msra.mxu0 %v1248
        %1267 = vmatprep.subr.mxu0 0.0
        %1268 = vmatpush1.msra.mxu0 %v1249
        %1269 = vmatprep.subr.mxu0 0.0
        %1270 = vmatpush1.msra.mxu0 %v1250
        %1271 = vmatprep.subr.mxu0 0.0
        %1272 = vmatpush1.msra.mxu0 0.0
        %1273 = vmatprep.subr.mxu0 0.0
        %1274 = vmatpush1.msra.mxu0 0.0
        %1275 = vmatprep.subr.mxu0 0.0
        %1276 = vmatpush1.msra.mxu0 0.0
        %1277 = vmatprep.subr.mxu0 0.0
        %1278 = vmatpush1.msra.mxu0 0.0
        %1279 = vmatprep.subr.mxu0 0.0
        %1280 = vmatpush1.msra.mxu0 0.0
        %1281 = vmatprep.subr.mxu0 0.0
        %1282 = vmatpush1.msra.mxu0 0.0
        %1283 = vmatprep.subr.mxu0 0.0
        %1284 = vmatpush1.msra.mxu0 0.0
        %1285 = vmatprep.subr.mxu0 0.0
        %1286 = vmatpush1.msra.mxu0 0.0
        %1287 = vmatprep.subr.mxu0 0.0
        %1288 = vmatpush1.msra.mxu0 0.0
        %1289 = vmatprep.subr.mxu0 0.0
        %1290 = vmatpush1.msra.mxu0 0.0
        %1291 = vmatprep.subr.mxu0 0.0
        %1292 = vmatpush1.msra.mxu0 0.0
        %1293 = vmatprep.subr.mxu0 0.0
        %1294 = vmatpush1.msra.mxu0 0.0
        %1295 = vmatprep.subr.mxu0 0.0
        %1296 = vmatpush1.msra.mxu0 0.0
        %1297 = vmatprep.subr.mxu0 0.0
        %1298 = vmatpush1.msra.mxu0 0.0
        %1299 = vmatprep.subr.mxu0 0.0
        %1300 = vmatpush1.msra.mxu0 0.0
        %1301 = vmatprep.subr.mxu0 0.0
        %1302 = vmatpush1.msra.mxu0 0.0
        %1303 = vmatprep.subr.mxu0 0.0
        %1304 = vmatpush1.msra.mxu0 0.0
        %1305 = vmatprep.subr.mxu0 0.0
        %1306 = vmatpush1.msra.mxu0 0.0
        %1307 = vmatprep.subr.mxu0 0.0
        %1308 = vmatpush1.msra.mxu0 0.0
        %1309 = vmatprep.subr.mxu0 0.0
        %1310 = vmatpush1.msra.mxu0 0.0
        %1311 = vmatprep.subr.mxu0 0.0
        %1312 = vmatpush1.msra.mxu0 0.0
        %1313 = vmatprep.subr.mxu0 0.0
        %1314 = vmatpush1.msra.mxu0 0.0
        %1315 = vmatprep.subr.mxu0 0.0
        %1316 = vmatpush1.msra.mxu0 0.0
        %1317 = vmatprep.subr.mxu0 0.0
        %1318 = vmatpush1.msra.mxu0 0.0
        %1319 = vmatprep.mubr.f32.mxu0 0.0
        %1320 = vmatmul.mubr.f32.gmra.mrb[0].mxu0 %v1253
        %v1321 = vpop.f32.mrb[0].mxu0
        %v1322 = vadd.f32 0.0, %v1321
        %v1323 = vpop.f32.mrb[0].mxu0
        %1324 = vdwg.mxu0
        %v1325 = vadd.f32 %v1160, %v1322
        %v1326 = vlaneseq
        %v1327 = vshrl.u32 %v1326, 7
        %v1328 = vsub.s32 3, %v1327
        %v1329 = vrot.slane %v274, %v1328
        %v1330 = vadd.f32 %v1325, %v1329
        %v1331 = vsel %vm283, %v1330, 0.0
        %1332 = vadd.xlane.f32.xlu0 %v1331
        %v1333 = vpop.xlane.xlu0 %1332
        %v1334 = vmul.f32 %v1333, %v1133
        %v1335 = vsub.f32 %v1330, %v1334
        %v1336 = vmul.f32 %v1335, %v1335
        %v1337 = vsel %vm283, %v1336, 0.0
        %1338 = vadd.xlane.f32.xlu0 %v1337
        %v1339 = vpop.xlane.xlu0 %1338
        %v1340 = vmul.f32 %v1339, 0.032258064
        %v1341 = vlaneseq
        %v1342 = vshrl.u32 %v1341, 7
        %v1343 = vsub.s32 6, %v1342
        %v1344 = vrot.slane %v274, %v1343
        %v1345 = vmul.f32 %v1344, %v1335
        %v1346 = vrsqrt.pop %v1340
        %v1347 = vmul.f32 %v1340, %v1346
        %vm1348 = vcmp.eq.f32.partialorder %v1340, inf
        %v1349 = vsel %vm1348, %v1340, %v1347
        %vm1350 = vcmp.eq.f32.partialorder %v1340, 0.0
        %v1351 = vand.u32 %v1340, 2147483648
        %v1352 = vsel %vm1350, %v1351, %v1349
        %v1353 = vadd.f32 %v1352, 1e-06
        %v1354 = vrcp.pop %v1353
        %v1355 = vmul.f32 %v1345, %v1354
        %v1356 = vlaneseq
        %v1357 = vshrl.u32 %v1356, 7
        %v1358 = vsub.s32 7, %v1357
        %v1359 = vrot.slane %v274, %v1358
        %v1360 = vadd.f32 %v1355, %v1359
        %v1361 = vlaneseq
        %v1362 = vshrl.u32 %v1361, 7
        %vm1363 = vcmp.lt.s32.totalorder %v1362, %v359
        %v1364 = vsel %vm1363, 1, 0
        %vm1365 = vcmp.eq.s32.totalorder %v1364, 1
        %v1366 = vsel %vm1365, %v1360, 0.0
        %1367 = vst.msk [vmem:[%s271] sm:$0xff] %vm283, %v1366
        %s1368 = sand.u32 %s167, 1
        %s1369 = scalar_lea.sflag [#allocation6], %s1368
        %s1370 = sand.u32 %s167, 1
        %s1371 = smul.addr %s1370, 8
        %s1372 = scalar_lea.vmem [#allocation7], %s1371
        // Predicated region
        $region49: #{tpu_custom_call.1} parent=43 // pred_check
          %p1373 = pneg %p177
        $region50: #{tpu_custom_call.1} parent=43 // pred_check_branch
          %1375 = sbr.rel (%p1373) target = $region52
        $region51: #{tpu_custom_call.1} parent=43 // pred_region
          %s1377 = ssub.s32 128, 128
          %1378 = vsyncadd %s1369, %s1377
          %s1379 = smul.addr %s28, 128
          %s1380 = scalar_lea.hbm %s7, %s1379
          %s1382 = sshll.u32 %s1372, 4
          %s1383 = int_to_ptr.vmem [resolvable:$true] %s1382
          %1385 = dma.vmem_to_hbm [thread:$0]  %s1383, 128, %s1380, %s1369
        $region52: #{tpu_custom_call.1} parent=43 // pred_fallthru
          _
      $region44: #{tpu_custom_call.1} parent=5 // pred_fallthru
        _
      %p1386 = scmp.le.s32.totalorder 2, %s23
      // Predicated region
      $region53: #{tpu_custom_call.1} parent=5 // pred_check
        %p1387 = pneg %p1386
      $region54: #{tpu_custom_call.1} parent=5 // pred_check_branch
        %1389 = sbr.rel (%p1387) target = $region56
      $region55: #{tpu_custom_call.1} parent=5 // pred_region
        %s1390 = ssub.s32 %s23, 2
        // Predicated region
        $region57: #{tpu_custom_call.1} parent=55 // pred_check
          %p1391 = pneg %p183
        $region58: #{tpu_custom_call.1} parent=55 // pred_check_branch
          %1393 = sbr.rel (%p1391) target = $region60
        $region59: #{tpu_custom_call.1} parent=55 // pred_region
          %s1394 = sand.u32 %s168, 1
          %s1395 = scalar_lea.sflag [#allocation6], %s1394
          %s1396 = sand.u32 %s168, 1
          %s1397 = smul.addr %s1396, 8
          %s1398 = scalar_lea.vmem [#allocation7], %s1397
          %1399 = dma.done %s1395, 128
        $region60: #{tpu_custom_call.1} parent=55 // pred_fallthru
          _
      $region56: #{tpu_custom_call.1} parent=5 // pred_fallthru
        _
    $region6: #{tpu_custom_call.1} parent=1 // loop_footer
      %s27 = sadd.s32 1, %s23
    $region7: #{tpu_custom_call.1} parent=1 // loop_footer_branch
      %22 = sbr.rel target = $region3
    $region8: #{tpu_custom_call.1} parent=1 // loop_exit
      _
    %1400 = vsyncpa [#allocation5], 1
    %s1401 = scalar_lea.sflag [#allocation5], 1
    %1402 = vsyncpa %s1401, 1
    %1403 = vsyncpa [#allocation6], 1
    %s1404 = scalar_lea.sflag [#allocation6], 1
    %1405 = vsyncpa %s1404, 1

</llo_original>
